<compile_context>
chip_gen: v7x
topology: tpu7x:2x2x1
jax: 0.10.0
libtpu: 0.0.40
codegen_flags: <defaults>
</compile_context>

<pallas_src>
import functools
import math

import jax
import jax.numpy as jnp
from jax.experimental import pallas as pl
from jax.experimental.pallas import tpu as pltpu


# ----------------------------- in-kernel helpers -----------------------------

_SQRT_HALF = 1.0 / math.sqrt(2.0)
_ERF_P = 0.3275911
_ERF_A = (0.254829592, -0.284496736, 1.421413741, -1.453152027, 1.061405429)


def _erf(x):
    # TODO(synk): Mosaic has no erf primitive; this is Abramowitz & Stegun
    # 7.1.26 (max abs error ~1.5e-7, i.e. f32-level) standing in for torch.erf.
    a1, a2, a3, a4, a5 = _ERF_A
    ax = jnp.abs(x)
    t = 1.0 / (1.0 + _ERF_P * ax)
    poly = ((((a5 * t + a4) * t + a3) * t + a2) * t + a1) * t
    y = 1.0 - poly * jnp.exp(-ax * ax)
    return jnp.where(x >= 0, y, -y)


def _gelu(x):
    # BERT exact-erf GELU: x * 0.5 * (1 + erf(x / sqrt(2)))
    return x * 0.5 * (1.0 + _erf(x * _SQRT_HALF))


def _layer_norm(y, g, b, eps=1e-12):
    # TF-style LayerNorm (epsilon inside the sqrt), stats over the last dim.
    u = jnp.mean(y, axis=-1, keepdims=True)
    var = jnp.mean(jnp.square(y - u), axis=-1, keepdims=True)
    return (y - u) * jax.lax.rsqrt(var + eps) * g + b


# ----------------------------- fused layer kernel -----------------------------

def _bert_layer_kernel(
    x_ref, bias_ref, wqkv_ref, bqkv_ref, wso_ref, bso_ref, ln1g_ref, ln1b_ref,
    wint_ref, bint_ref, wout_ref, bout_ref, ln2g_ref, ln2b_ref, o_ref,
    *, num_heads, head_dim):
    hidden = num_heads * head_dim
    x = x_ref[...]                                                   # (B*S, H)
    bias = bias_ref[...]                                             # (B*S, B*S)

    # ---- fused query|key|value projection: one lane-dense (B*S, 3H) GEMM ----
    qkv = (jnp.dot(x, wqkv_ref[...], preferred_element_type=jnp.float32)
           + bqkv_ref[...])
    q = qkv[:, :hidden]                 # 1/sqrt(d) already folded into W_q/b_q
    k = qkv[:, hidden:2 * hidden]
    v = qkv[:, 2 * hidden:]

    # ---- multi-head attention via lane masks (no sub-128 lane slicing) ----
    lane = jax.lax.broadcasted_iota(jnp.int32, (1, hidden), 1)
    ctx = jnp.zeros(x.shape, jnp.float32)
    for h in range(num_heads):                                       # static unroll
        c0 = h * head_dim
        mh = ((lane >= c0) & (lane < c0 + head_dim)).astype(jnp.float32)  # (1, H)
        # (Q*mask_h) @ K^T == per-head scores; off-head lanes contribute 0.
        s = jax.lax.dot_general(q * mh, k, (((1,), (1,)), ((), ())),
                                preferred_element_type=jnp.float32) + bias
        s = s - jnp.max(s, axis=-1, keepdims=True)
        p = jnp.exp(s)
        p = p / jnp.sum(p, axis=-1, keepdims=True)                   # softmax(dim=-1)
        # (P @ V)*mask_h keeps exactly the head-h context lanes; summing over
        # heads reproduces the merged-heads context layer (no transpose/concat).
        ctx = ctx + jnp.dot(p, v, preferred_element_type=jnp.float32) * mh

    # ---- BertSelfOutput: LayerNorm(dense(ctx) + hidden_states) ----
    attn_dense = (jnp.dot(ctx, wso_ref[...], preferred_element_type=jnp.float32)
                  + bso_ref[...])
    attn_out = _layer_norm(attn_dense + x, ln1g_ref[...], ln1b_ref[...])

    # ---- BertIntermediate: GELU(dense(attn_out)) ----
    inter = (jnp.dot(attn_out, wint_ref[...], preferred_element_type=jnp.float32)
             + bint_ref[...])
    inter = _gelu(inter)

    # ---- BertOutput: LayerNorm(dense(inter) + attn_out) ----
    out = (jnp.dot(inter, wout_ref[...], preferred_element_type=jnp.float32)
           + bout_ref[...])
    o_ref[...] = _layer_norm(out + attn_out, ln2g_ref[...], ln2b_ref[...])


# ----------------------------- wrappers -----------------------------

def bert_layer_forward(hidden_states, attention_mask, lp, *, num_heads):
    """One BertLayer forward pass as a single fused Pallas kernel."""
    B, S, H = hidden_states.shape
    head_dim = H // num_heads
    scale = 1.0 / math.sqrt(head_dim)

    x2 = hidden_states.reshape(B * S, H)

    # Combined additive attention bias: padding mask (broadcast over query rows)
    # + block-diagonal batch mask, so all batches share one (B*S, B*S) score
    # tile inside the kernel.  Cross-batch logits sit at -1e9 and underflow to
    # exactly 0 after exp, so per-batch softmax semantics are preserved.
    m_flat = attention_mask.reshape(1, B * S).astype(jnp.float32)    # [B,1,1,S] -> (1, B*S)
    bids = jnp.arange(B * S, dtype=jnp.int32) // S
    block = jnp.where(bids[:, None] == bids[None, :], 0.0, -1e9).astype(jnp.float32)
    bias = m_flat + block                                            # (B*S, B*S)

    # Merge Q/K/V into one lane-dense [H, 3H] weight; fold 1/sqrt(d) into Q.
    wqkv = jnp.concatenate([lp['wq'] * scale, lp['wk'], lp['wv']], axis=1)
    bqkv = jnp.concatenate([lp['bq'] * scale, lp['bk'], lp['bv']], axis=1)

    kernel = functools.partial(_bert_layer_kernel,
                               num_heads=num_heads, head_dim=head_dim)

    vmem = pl.BlockSpec(memory_space=pltpu.MemorySpace.VMEM)
    out2 = pl.pallas_call(
        kernel,
        out_shape=jax.ShapeDtypeStruct((B * S, H), jnp.float32),
        in_specs=[vmem] * 14,
        out_specs=vmem,
    )(x2, bias, wqkv, bqkv,
      lp['w_so'], lp['b_so'], lp['ln1_g'], lp['ln1_b'],
      lp['w_int'], lp['b_int'], lp['w_out'], lp['b_out'],
      lp['ln2_g'], lp['ln2_b'])
    return out2.reshape(B, S, H)


def bert_skip_encoder(hidden_states, attention_mask, layer_params, *,
                      num_heads, output_all_encoded_layers=True):
    """BertSkipEncoder.forward: loop over layers, collect encoded layers."""
    all_encoder_layers = []
    h = hidden_states
    for lp in layer_params:
        h = bert_layer_forward(h, attention_mask, lp, num_heads=num_heads)
        if output_all_encoded_layers:
            all_encoder_layers.append(h)
    if not output_all_encoded_layers:
        all_encoder_layers.append(h)
    return all_encoder_layers


def init_params(key, hidden_size, intermediate_size, num_layers=1):
    """Per-layer weights (stored as [in, out], i.e. transposed vs. torch Linear)."""
    def linear_init(k, din, dout):
        kw, kb = jax.random.split(k)
        w = jax.random.normal(kw, (din, dout), jnp.float32) * 0.02
        b = jax.random.normal(kb, (1, dout), jnp.float32) * 0.02
        return w, b

    layers = []
    for lk in jax.random.split(key, num_layers):
        ks = jax.random.split(lk, 6)
        wq, bq = linear_init(ks[0], hidden_size, hidden_size)
        wk, bk = linear_init(ks[1], hidden_size, hidden_size)
        wv, bv = linear_init(ks[2], hidden_size, hidden_size)
        w_so, b_so = linear_init(ks[3], hidden_size, hidden_size)
        w_int, b_int = linear_init(ks[4], hidden_size, intermediate_size)
        w_out, b_out = linear_init(ks[5], intermediate_size, hidden_size)
        layers.append(dict(
            wq=wq, bq=bq, wk=wk, bk=bk, wv=wv, bv=bv,
            w_so=w_so, b_so=b_so,
            ln1_g=jnp.ones((1, hidden_size), jnp.float32),
            ln1_b=jnp.zeros((1, hidden_size), jnp.float32),
            w_int=w_int, b_int=b_int,
            w_out=w_out, b_out=b_out,
            ln2_g=jnp.ones((1, hidden_size), jnp.float32),
            ln2_b=jnp.zeros((1, hidden_size), jnp.float32),
        ))
    return layers


# ----------------------------- pure-JAX reference -----------------------------

def _reference_bert_layer(hidden_states, attention_mask, lp, *, num_heads):
    """Plain-JAX mirror of the PyTorch BertLayer (dropout = identity)."""
    B, S, H = hidden_states.shape
    d = H // num_heads
    hi = jax.lax.Precision.HIGHEST

    def lin(x, w, b):
        return jnp.dot(x, w, precision=hi) + b

    def ln(x, g, b, eps=1e-12):
        u = x.mean(-1, keepdims=True)
        v = ((x - u) ** 2).mean(-1, keepdims=True)
        return (x - u) / jnp.sqrt(v + eps) * g + b

    x2 = hidden_states.reshape(B * S, H)

    def heads(y):
        return y.reshape(B, S, num_heads, d).transpose(0, 2, 1, 3)

    q = heads(lin(x2, lp['wq'], lp['bq']))
    k = heads(lin(x2, lp['wk'], lp['bk']))
    v = heads(lin(x2, lp['wv'], lp['bv']))
    s = jnp.einsum('bhqd,bhkd->bhqk', q, k, precision=hi) / math.sqrt(d)
    s = s + attention_mask                              # (B,1,1,S) broadcast
    p = jax.nn.softmax(s, axis=-1)
    ctx = jnp.einsum('bhqk,bhkd->bhqd', p, v, precision=hi)
    ctx = ctx.transpose(0, 2, 1, 3).reshape(B * S, H)
    attn_out = ln(lin(ctx, lp['w_so'], lp['b_so']) + x2, lp['ln1_g'], lp['ln1_b'])
    inter = lin(attn_out, lp['w_int'], lp['b_int'])
    inter = inter * 0.5 * (1.0 + jax.scipy.special.erf(inter / math.sqrt(2.0)))
    out = ln(lin(inter, lp['w_out'], lp['b_out']) + attn_out, lp['ln2_g'], lp['ln2_b'])
    return out.reshape(B, S, H)


# ----------------------------- main -----------------------------

if __name__ == "__main__":
    B, S, H, NH, INTER = 2, 8, 32, 4, 64   # hidden=32, 4 heads (d=8), intermediate=64

    key = jax.random.PRNGKey(0)
    k_h, k_p = jax.random.split(key)
    hidden_states = jax.random.normal(k_h, (B, S, H), jnp.float32)

    # BERT-style extended additive mask: [B, 1, 1, S], 0 = keep, -10000 = pad.
    valid = jnp.array([[1.0] * 8, [1.0] * 6 + [0.0] * 2], jnp.float32)
    attention_mask = (1.0 - valid)[:, None, None, :] * -10000.0

    # BertSkipEncoder holds exactly one BertLayer (ModuleList of one deepcopy).
    params = init_params(k_p, H, INTER, num_layers=1)

    fwd = jax.jit(functools.partial(bert_skip_encoder, num_heads=NH))
    encoded_layers = fwd(hidden_states, attention_mask, params)
    jax.block_until_ready(encoded_layers)

    assert len(encoded_layers) == 1
    assert encoded_layers[0].shape == (B, S, H)
    assert bool(jnp.all(jnp.isfinite(encoded_layers[0])))

    # Numerical check against the pure-JAX reference of the PyTorch module.
    ref = hidden_states
    for lp in params:
        ref = _reference_bert_layer(ref, attention_mask, lp, num_heads=NH)
    max_err = float(jnp.max(jnp.abs(encoded_layers[-1] - ref)))
    assert max_err < 2e-3, f"kernel vs reference mismatch: {max_err}"

    print("KERNEL_OK")
</pallas_src>

<mosaic_0001>
module attributes {stable_mosaic.version = 11 : i64} {
  func.func @_bert_layer_kernel(%arg0: memref<16x32xf32, #tpu.memory_space<vmem>>, %arg1: memref<16x16xf32, #tpu.memory_space<vmem>>, %arg2: memref<32x96xf32, #tpu.memory_space<vmem>>, %arg3: memref<1x96xf32, #tpu.memory_space<vmem>>, %arg4: memref<32x32xf32, #tpu.memory_space<vmem>>, %arg5: memref<1x32xf32, #tpu.memory_space<vmem>>, %arg6: memref<1x32xf32, #tpu.memory_space<vmem>>, %arg7: memref<1x32xf32, #tpu.memory_space<vmem>>, %arg8: memref<32x64xf32, #tpu.memory_space<vmem>>, %arg9: memref<1x64xf32, #tpu.memory_space<vmem>>, %arg10: memref<64x32xf32, #tpu.memory_space<vmem>>, %arg11: memref<1x32xf32, #tpu.memory_space<vmem>>, %arg12: memref<1x32xf32, #tpu.memory_space<vmem>>, %arg13: memref<1x32xf32, #tpu.memory_space<vmem>>, %arg14: memref<16x32xf32, #tpu.memory_space<vmem>>) attributes {dimension_semantics = [], scalar_prefetch = 0 : i64, scratch_operands = 0 : i64, tpu.core_type = #tpu.core_type<tc>} {
    %c0 = arith.constant 0 : index
    %c0_0 = arith.constant 0 : index
    %0 = vector.load %arg0[%c0, %c0_0] : memref<16x32xf32, #tpu.memory_space<vmem>>, vector<16x32xf32>
    %c0_1 = arith.constant 0 : index
    %c0_2 = arith.constant 0 : index
    %1 = vector.load %arg1[%c0_1, %c0_2] : memref<16x16xf32, #tpu.memory_space<vmem>>, vector<16x16xf32>
    %c0_3 = arith.constant 0 : index
    %c0_4 = arith.constant 0 : index
    %2 = vector.load %arg2[%c0_3, %c0_4] : memref<32x96xf32, #tpu.memory_space<vmem>>, vector<32x96xf32>
    %cst = arith.constant dense<0.000000e+00> : vector<16x96xf32>
    %3 = tpu.matmul %0, %2, %cst {dimension_numbers = #tpu.dot_dimension_numbers<[1], [0], [0], [1], [0, 0, 1, 1], [], []>} : vector<16x32xf32>, vector<32x96xf32>, vector<16x96xf32> -> vector<16x96xf32>
    %c0_5 = arith.constant 0 : index
    %c0_6 = arith.constant 0 : index
    %4 = vector.load %arg3[%c0_5, %c0_6] : memref<1x96xf32, #tpu.memory_space<vmem>>, vector<1x96xf32>
    %5 = vector.broadcast %4 : vector<1x96xf32> to vector<16x96xf32>
    %6 = arith.addf %3, %5 : vector<16x96xf32>
    %7 = vector.extract_strided_slice %6 {offsets = [0, 0], sizes = [16, 32], strides = [1, 1]} : vector<16x96xf32> to vector<16x32xf32>
    %8 = vector.extract_strided_slice %6 {offsets = [0, 32], sizes = [16, 32], strides = [1, 1]} : vector<16x96xf32> to vector<16x32xf32>
    %9 = vector.extract_strided_slice %6 {offsets = [0, 64], sizes = [16, 32], strides = [1, 1]} : vector<16x96xf32> to vector<16x32xf32>
    %10 = tpu.iota {dimensions = array<i32: 1>} : vector<1x32xi32>
    %cst_7 = arith.constant 0.000000e+00 : f32
    %11 = vector.broadcast %cst_7 : f32 to vector<16x32xf32>
    %c0_i32 = arith.constant 0 : i32
    %12 = vector.broadcast %c0_i32 : i32 to vector<1x32xi32>
    %13 = arith.cmpi sge, %10, %12 : vector<1x32xi32>
    %c8_i32 = arith.constant 8 : i32
    %14 = vector.broadcast %c8_i32 : i32 to vector<1x32xi32>
    %15 = arith.cmpi slt, %10, %14 : vector<1x32xi32>
    %16 = arith.andi %13, %15 : vector<1x32xi1>
    %17 = arith.extui %16 : vector<1x32xi1> to vector<1x32xi32>
    %18 = arith.sitofp %17 : vector<1x32xi32> to vector<1x32xf32>
    %19 = vector.broadcast %18 : vector<1x32xf32> to vector<16x32xf32>
    %20 = arith.mulf %7, %19 : vector<16x32xf32>
    %cst_8 = arith.constant dense<0.000000e+00> : vector<16x16xf32>
    %21 = tpu.matmul %20, %8, %cst_8 {dimension_numbers = #tpu.dot_dimension_numbers<[1], [1], [0], [0], [0, 0, 1, 0], [], []>} : vector<16x32xf32>, vector<16x32xf32>, vector<16x16xf32> -> vector<16x16xf32>
    %22 = arith.addf %21, %1 : vector<16x16xf32>
    %cst_9 = arith.constant dense<0xFF800000> : vector<16xf32>
    %23 = vector.multi_reduction <maximumf>, %22, %cst_9 [1] : vector<16x16xf32> to vector<16xf32>
    %24 = vector.shape_cast %23 : vector<16xf32> to vector<16x1xf32>
    %25 = vector.broadcast %24 : vector<16x1xf32> to vector<16x16xf32>
    %26 = arith.subf %22, %25 : vector<16x16xf32>
    %27 = math.exp %26 : vector<16x16xf32>
    %cst_10 = arith.constant dense<0.000000e+00> : vector<16xf32>
    %28 = vector.multi_reduction <add>, %27, %cst_10 [1] : vector<16x16xf32> to vector<16xf32>
    %29 = vector.shape_cast %28 : vector<16xf32> to vector<16x1xf32>
    %30 = vector.broadcast %29 : vector<16x1xf32> to vector<16x16xf32>
    %31 = arith.divf %27, %30 : vector<16x16xf32>
    %cst_11 = arith.constant dense<0.000000e+00> : vector<16x32xf32>
    %32 = tpu.matmul %31, %9, %cst_11 {dimension_numbers = #tpu.dot_dimension_numbers<[1], [0], [0], [1], [0, 0, 1, 1], [], []>} : vector<16x16xf32>, vector<16x32xf32>, vector<16x32xf32> -> vector<16x32xf32>
    %33 = vector.broadcast %18 : vector<1x32xf32> to vector<16x32xf32>
    %34 = arith.mulf %32, %33 : vector<16x32xf32>
    %35 = arith.addf %11, %34 : vector<16x32xf32>
    %c8_i32_12 = arith.constant 8 : i32
    %36 = vector.broadcast %c8_i32_12 : i32 to vector<1x32xi32>
    %37 = arith.cmpi sge, %10, %36 : vector<1x32xi32>
    %c16_i32 = arith.constant 16 : i32
    %38 = vector.broadcast %c16_i32 : i32 to vector<1x32xi32>
    %39 = arith.cmpi slt, %10, %38 : vector<1x32xi32>
    %40 = arith.andi %37, %39 : vector<1x32xi1>
    %41 = arith.extui %40 : vector<1x32xi1> to vector<1x32xi32>
    %42 = arith.sitofp %41 : vector<1x32xi32> to vector<1x32xf32>
    %43 = vector.broadcast %42 : vector<1x32xf32> to vector<16x32xf32>
    %44 = arith.mulf %7, %43 : vector<16x32xf32>
    %cst_13 = arith.constant dense<0.000000e+00> : vector<16x16xf32>
    %45 = tpu.matmul %44, %8, %cst_13 {dimension_numbers = #tpu.dot_dimension_numbers<[1], [1], [0], [0], [0, 0, 1, 0], [], []>} : vector<16x32xf32>, vector<16x32xf32>, vector<16x16xf32> -> vector<16x16xf32>
    %46 = arith.addf %45, %1 : vector<16x16xf32>
    %cst_14 = arith.constant dense<0xFF800000> : vector<16xf32>
    %47 = vector.multi_reduction <maximumf>, %46, %cst_14 [1] : vector<16x16xf32> to vector<16xf32>
    %48 = vector.shape_cast %47 : vector<16xf32> to vector<16x1xf32>
    %49 = vector.broadcast %48 : vector<16x1xf32> to vector<16x16xf32>
    %50 = arith.subf %46, %49 : vector<16x16xf32>
    %51 = math.exp %50 : vector<16x16xf32>
    %cst_15 = arith.constant dense<0.000000e+00> : vector<16xf32>
    %52 = vector.multi_reduction <add>, %51, %cst_15 [1] : vector<16x16xf32> to vector<16xf32>
    %53 = vector.shape_cast %52 : vector<16xf32> to vector<16x1xf32>
    %54 = vector.broadcast %53 : vector<16x1xf32> to vector<16x16xf32>
    %55 = arith.divf %51, %54 : vector<16x16xf32>
    %cst_16 = arith.constant dense<0.000000e+00> : vector<16x32xf32>
    %56 = tpu.matmul %55, %9, %cst_16 {dimension_numbers = #tpu.dot_dimension_numbers<[1], [0], [0], [1], [0, 0, 1, 1], [], []>} : vector<16x16xf32>, vector<16x32xf32>, vector<16x32xf32> -> vector<16x32xf32>
    %57 = vector.broadcast %42 : vector<1x32xf32> to vector<16x32xf32>
    %58 = arith.mulf %56, %57 : vector<16x32xf32>
    %59 = arith.addf %35, %58 : vector<16x32xf32>
    %c16_i32_17 = arith.constant 16 : i32
    %60 = vector.broadcast %c16_i32_17 : i32 to vector<1x32xi32>
    %61 = arith.cmpi sge, %10, %60 : vector<1x32xi32>
    %c24_i32 = arith.constant 24 : i32
    %62 = vector.broadcast %c24_i32 : i32 to vector<1x32xi32>
    %63 = arith.cmpi slt, %10, %62 : vector<1x32xi32>
    %64 = arith.andi %61, %63 : vector<1x32xi1>
    %65 = arith.extui %64 : vector<1x32xi1> to vector<1x32xi32>
    %66 = arith.sitofp %65 : vector<1x32xi32> to vector<1x32xf32>
    %67 = vector.broadcast %66 : vector<1x32xf32> to vector<16x32xf32>
    %68 = arith.mulf %7, %67 : vector<16x32xf32>
    %cst_18 = arith.constant dense<0.000000e+00> : vector<16x16xf32>
    %69 = tpu.matmul %68, %8, %cst_18 {dimension_numbers = #tpu.dot_dimension_numbers<[1], [1], [0], [0], [0, 0, 1, 0], [], []>} : vector<16x32xf32>, vector<16x32xf32>, vector<16x16xf32> -> vector<16x16xf32>
    %70 = arith.addf %69, %1 : vector<16x16xf32>
    %cst_19 = arith.constant dense<0xFF800000> : vector<16xf32>
    %71 = vector.multi_reduction <maximumf>, %70, %cst_19 [1] : vector<16x16xf32> to vector<16xf32>
    %72 = vector.shape_cast %71 : vector<16xf32> to vector<16x1xf32>
    %73 = vector.broadcast %72 : vector<16x1xf32> to vector<16x16xf32>
    %74 = arith.subf %70, %73 : vector<16x16xf32>
    %75 = math.exp %74 : vector<16x16xf32>
    %cst_20 = arith.constant dense<0.000000e+00> : vector<16xf32>
    %76 = vector.multi_reduction <add>, %75, %cst_20 [1] : vector<16x16xf32> to vector<16xf32>
    %77 = vector.shape_cast %76 : vector<16xf32> to vector<16x1xf32>
    %78 = vector.broadcast %77 : vector<16x1xf32> to vector<16x16xf32>
    %79 = arith.divf %75, %78 : vector<16x16xf32>
    %cst_21 = arith.constant dense<0.000000e+00> : vector<16x32xf32>
    %80 = tpu.matmul %79, %9, %cst_21 {dimension_numbers = #tpu.dot_dimension_numbers<[1], [0], [0], [1], [0, 0, 1, 1], [], []>} : vector<16x16xf32>, vector<16x32xf32>, vector<16x32xf32> -> vector<16x32xf32>
    %81 = vector.broadcast %66 : vector<1x32xf32> to vector<16x32xf32>
    %82 = arith.mulf %80, %81 : vector<16x32xf32>
    %83 = arith.addf %59, %82 : vector<16x32xf32>
    %c24_i32_22 = arith.constant 24 : i32
    %84 = vector.broadcast %c24_i32_22 : i32 to vector<1x32xi32>
    %85 = arith.cmpi sge, %10, %84 : vector<1x32xi32>
    %c32_i32 = arith.constant 32 : i32
    %86 = vector.broadcast %c32_i32 : i32 to vector<1x32xi32>
    %87 = arith.cmpi slt, %10, %86 : vector<1x32xi32>
    %88 = arith.andi %85, %87 : vector<1x32xi1>
    %89 = arith.extui %88 : vector<1x32xi1> to vector<1x32xi32>
    %90 = arith.sitofp %89 : vector<1x32xi32> to vector<1x32xf32>
    %91 = vector.broadcast %90 : vector<1x32xf32> to vector<16x32xf32>
    %92 = arith.mulf %7, %91 : vector<16x32xf32>
    %cst_23 = arith.constant dense<0.000000e+00> : vector<16x16xf32>
    %93 = tpu.matmul %92, %8, %cst_23 {dimension_numbers = #tpu.dot_dimension_numbers<[1], [1], [0], [0], [0, 0, 1, 0], [], []>} : vector<16x32xf32>, vector<16x32xf32>, vector<16x16xf32> -> vector<16x16xf32>
    %94 = arith.addf %93, %1 : vector<16x16xf32>
    %cst_24 = arith.constant dense<0xFF800000> : vector<16xf32>
    %95 = vector.multi_reduction <maximumf>, %94, %cst_24 [1] : vector<16x16xf32> to vector<16xf32>
    %96 = vector.shape_cast %95 : vector<16xf32> to vector<16x1xf32>
    %97 = vector.broadcast %96 : vector<16x1xf32> to vector<16x16xf32>
    %98 = arith.subf %94, %97 : vector<16x16xf32>
    %99 = math.exp %98 : vector<16x16xf32>
    %cst_25 = arith.constant dense<0.000000e+00> : vector<16xf32>
    %100 = vector.multi_reduction <add>, %99, %cst_25 [1] : vector<16x16xf32> to vector<16xf32>
    %101 = vector.shape_cast %100 : vector<16xf32> to vector<16x1xf32>
    %102 = vector.broadcast %101 : vector<16x1xf32> to vector<16x16xf32>
    %103 = arith.divf %99, %102 : vector<16x16xf32>
    %cst_26 = arith.constant dense<0.000000e+00> : vector<16x32xf32>
    %104 = tpu.matmul %103, %9, %cst_26 {dimension_numbers = #tpu.dot_dimension_numbers<[1], [0], [0], [1], [0, 0, 1, 1], [], []>} : vector<16x16xf32>, vector<16x32xf32>, vector<16x32xf32> -> vector<16x32xf32>
    %105 = vector.broadcast %90 : vector<1x32xf32> to vector<16x32xf32>
    %106 = arith.mulf %104, %105 : vector<16x32xf32>
    %107 = arith.addf %83, %106 : vector<16x32xf32>
    %c0_27 = arith.constant 0 : index
    %c0_28 = arith.constant 0 : index
    %108 = vector.load %arg4[%c0_27, %c0_28] : memref<32x32xf32, #tpu.memory_space<vmem>>, vector<32x32xf32>
    %cst_29 = arith.constant dense<0.000000e+00> : vector<16x32xf32>
    %109 = tpu.matmul %107, %108, %cst_29 {dimension_numbers = #tpu.dot_dimension_numbers<[1], [0], [0], [1], [0, 0, 1, 1], [], []>} : vector<16x32xf32>, vector<32x32xf32>, vector<16x32xf32> -> vector<16x32xf32>
    %c0_30 = arith.constant 0 : index
    %c0_31 = arith.constant 0 : index
    %110 = vector.load %arg5[%c0_30, %c0_31] : memref<1x32xf32, #tpu.memory_space<vmem>>, vector<1x32xf32>
    %111 = vector.broadcast %110 : vector<1x32xf32> to vector<16x32xf32>
    %112 = arith.addf %109, %111 : vector<16x32xf32>
    %113 = arith.addf %112, %0 : vector<16x32xf32>
    %c0_32 = arith.constant 0 : index
    %c0_33 = arith.constant 0 : index
    %114 = vector.load %arg6[%c0_32, %c0_33] : memref<1x32xf32, #tpu.memory_space<vmem>>, vector<1x32xf32>
    %c0_34 = arith.constant 0 : index
    %c0_35 = arith.constant 0 : index
    %115 = vector.load %arg7[%c0_34, %c0_35] : memref<1x32xf32, #tpu.memory_space<vmem>>, vector<1x32xf32>
    %cst_36 = arith.constant dense<0.000000e+00> : vector<16xf32>
    %116 = vector.multi_reduction <add>, %113, %cst_36 [1] : vector<16x32xf32> to vector<16xf32>
    %117 = vector.shape_cast %116 : vector<16xf32> to vector<16x1xf32>
    %cst_37 = arith.constant 3.200000e+01 : f32
    %118 = vector.broadcast %cst_37 : f32 to vector<16x1xf32>
    %119 = arith.divf %117, %118 : vector<16x1xf32>
    %120 = vector.broadcast %119 : vector<16x1xf32> to vector<16x32xf32>
    %121 = arith.subf %113, %120 : vector<16x32xf32>
    %122 = arith.mulf %121, %121 : vector<16x32xf32>
    %cst_38 = arith.constant dense<0.000000e+00> : vector<16xf32>
    %123 = vector.multi_reduction <add>, %122, %cst_38 [1] : vector<16x32xf32> to vector<16xf32>
    %124 = vector.shape_cast %123 : vector<16xf32> to vector<16x1xf32>
    %cst_39 = arith.constant 3.200000e+01 : f32
    %125 = vector.broadcast %cst_39 : f32 to vector<16x1xf32>
    %126 = arith.divf %124, %125 : vector<16x1xf32>
    %127 = vector.broadcast %119 : vector<16x1xf32> to vector<16x32xf32>
    %128 = arith.subf %113, %127 : vector<16x32xf32>
    %cst_40 = arith.constant 9.99999996E-13 : f32
    %129 = vector.broadcast %cst_40 : f32 to vector<16x1xf32>
    %130 = arith.addf %126, %129 : vector<16x1xf32>
    %131 = math.rsqrt %130 : vector<16x1xf32>
    %132 = vector.broadcast %131 : vector<16x1xf32> to vector<16x32xf32>
    %133 = arith.mulf %128, %132 : vector<16x32xf32>
    %134 = vector.broadcast %114 : vector<1x32xf32> to vector<16x32xf32>
    %135 = arith.mulf %133, %134 : vector<16x32xf32>
    %136 = vector.broadcast %115 : vector<1x32xf32> to vector<16x32xf32>
    %137 = arith.addf %135, %136 : vector<16x32xf32>
    %c0_41 = arith.constant 0 : index
    %c0_42 = arith.constant 0 : index
    %138 = vector.load %arg8[%c0_41, %c0_42] : memref<32x64xf32, #tpu.memory_space<vmem>>, vector<32x64xf32>
    %cst_43 = arith.constant dense<0.000000e+00> : vector<16x64xf32>
    %139 = tpu.matmul %137, %138, %cst_43 {dimension_numbers = #tpu.dot_dimension_numbers<[1], [0], [0], [1], [0, 0, 1, 1], [], []>} : vector<16x32xf32>, vector<32x64xf32>, vector<16x64xf32> -> vector<16x64xf32>
    %c0_44 = arith.constant 0 : index
    %c0_45 = arith.constant 0 : index
    %140 = vector.load %arg9[%c0_44, %c0_45] : memref<1x64xf32, #tpu.memory_space<vmem>>, vector<1x64xf32>
    %141 = vector.broadcast %140 : vector<1x64xf32> to vector<16x64xf32>
    %142 = arith.addf %139, %141 : vector<16x64xf32>
    %cst_46 = arith.constant 5.000000e-01 : f32
    %143 = vector.broadcast %cst_46 : f32 to vector<16x64xf32>
    %144 = arith.mulf %142, %143 : vector<16x64xf32>
    %cst_47 = arith.constant 0.707106769 : f32
    %145 = vector.broadcast %cst_47 : f32 to vector<16x64xf32>
    %146 = arith.mulf %142, %145 : vector<16x64xf32>
    %147 = math.absf %146 : vector<16x64xf32>
    %cst_48 = arith.constant 0.327591091 : f32
    %148 = vector.broadcast %cst_48 : f32 to vector<16x64xf32>
    %149 = arith.mulf %148, %147 : vector<16x64xf32>
    %cst_49 = arith.constant 1.000000e+00 : f32
    %150 = vector.broadcast %cst_49 : f32 to vector<16x64xf32>
    %151 = arith.addf %150, %149 : vector<16x64xf32>
    %cst_50 = arith.constant 1.000000e+00 : f32
    %152 = vector.broadcast %cst_50 : f32 to vector<16x64xf32>
    %153 = arith.divf %152, %151 : vector<16x64xf32>
    %cst_51 = arith.constant 1.06140542 : f32
    %154 = vector.broadcast %cst_51 : f32 to vector<16x64xf32>
    %155 = arith.mulf %154, %153 : vector<16x64xf32>
    %cst_52 = arith.constant -1.45315206 : f32
    %156 = vector.broadcast %cst_52 : f32 to vector<16x64xf32>
    %157 = arith.addf %155, %156 : vector<16x64xf32>
    %158 = arith.mulf %157, %153 : vector<16x64xf32>
    %cst_53 = arith.constant 1.42141378 : f32
    %159 = vector.broadcast %cst_53 : f32 to vector<16x64xf32>
    %160 = arith.addf %158, %159 : vector<16x64xf32>
    %161 = arith.mulf %160, %153 : vector<16x64xf32>
    %cst_54 = arith.constant -0.284496725 : f32
    %162 = vector.broadcast %cst_54 : f32 to vector<16x64xf32>
    %163 = arith.addf %161, %162 : vector<16x64xf32>
    %164 = arith.mulf %163, %153 : vector<16x64xf32>
    %cst_55 = arith.constant 0.254829586 : f32
    %165 = vector.broadcast %cst_55 : f32 to vector<16x64xf32>
    %166 = arith.addf %164, %165 : vector<16x64xf32>
    %167 = arith.mulf %166, %153 : vector<16x64xf32>
    %cst_56 = arith.constant 0.000000e+00 : f32
    %168 = vector.broadcast %cst_56 : f32 to vector<16x64xf32>
    %169 = arith.subf %168, %147 : vector<16x64xf32>
    %170 = arith.mulf %169, %147 : vector<16x64xf32>
    %171 = math.exp %170 : vector<16x64xf32>
    %172 = arith.mulf %167, %171 : vector<16x64xf32>
    %cst_57 = arith.constant 1.000000e+00 : f32
    %173 = vector.broadcast %cst_57 : f32 to vector<16x64xf32>
    %174 = arith.subf %173, %172 : vector<16x64xf32>
    %cst_58 = arith.constant 0.000000e+00 : f32
    %175 = vector.broadcast %cst_58 : f32 to vector<16x64xf32>
    %176 = arith.cmpf oge, %146, %175 : vector<16x64xf32>
    %cst_59 = arith.constant 0.000000e+00 : f32
    %177 = vector.broadcast %cst_59 : f32 to vector<16x64xf32>
    %178 = arith.subf %177, %174 : vector<16x64xf32>
    %179 = arith.select %176, %174, %178 : vector<16x64xi1>, vector<16x64xf32>
    %cst_60 = arith.constant 1.000000e+00 : f32
    %180 = vector.broadcast %cst_60 : f32 to vector<16x64xf32>
    %181 = arith.addf %180, %179 : vector<16x64xf32>
    %182 = arith.mulf %144, %181 : vector<16x64xf32>
    %c0_61 = arith.constant 0 : index
    %c0_62 = arith.constant 0 : index
    %183 = vector.load %arg10[%c0_61, %c0_62] : memref<64x32xf32, #tpu.memory_space<vmem>>, vector<64x32xf32>
    %cst_63 = arith.constant dense<0.000000e+00> : vector<16x32xf32>
    %184 = tpu.matmul %182, %183, %cst_63 {dimension_numbers = #tpu.dot_dimension_numbers<[1], [0], [0], [1], [0, 0, 1, 1], [], []>} : vector<16x64xf32>, vector<64x32xf32>, vector<16x32xf32> -> vector<16x32xf32>
    %c0_64 = arith.constant 0 : index
    %c0_65 = arith.constant 0 : index
    %185 = vector.load %arg11[%c0_64, %c0_65] : memref<1x32xf32, #tpu.memory_space<vmem>>, vector<1x32xf32>
    %186 = vector.broadcast %185 : vector<1x32xf32> to vector<16x32xf32>
    %187 = arith.addf %184, %186 : vector<16x32xf32>
    %188 = arith.addf %187, %137 : vector<16x32xf32>
    %c0_66 = arith.constant 0 : index
    %c0_67 = arith.constant 0 : index
    %189 = vector.load %arg12[%c0_66, %c0_67] : memref<1x32xf32, #tpu.memory_space<vmem>>, vector<1x32xf32>
    %c0_68 = arith.constant 0 : index
    %c0_69 = arith.constant 0 : index
    %190 = vector.load %arg13[%c0_68, %c0_69] : memref<1x32xf32, #tpu.memory_space<vmem>>, vector<1x32xf32>
    %cst_70 = arith.constant dense<0.000000e+00> : vector<16xf32>
    %191 = vector.multi_reduction <add>, %188, %cst_70 [1] : vector<16x32xf32> to vector<16xf32>
    %192 = vector.shape_cast %191 : vector<16xf32> to vector<16x1xf32>
    %cst_71 = arith.constant 3.200000e+01 : f32
    %193 = vector.broadcast %cst_71 : f32 to vector<16x1xf32>
    %194 = arith.divf %192, %193 : vector<16x1xf32>
    %195 = vector.broadcast %194 : vector<16x1xf32> to vector<16x32xf32>
    %196 = arith.subf %188, %195 : vector<16x32xf32>
    %197 = arith.mulf %196, %196 : vector<16x32xf32>
    %cst_72 = arith.constant dense<0.000000e+00> : vector<16xf32>
    %198 = vector.multi_reduction <add>, %197, %cst_72 [1] : vector<16x32xf32> to vector<16xf32>
    %199 = vector.shape_cast %198 : vector<16xf32> to vector<16x1xf32>
    %cst_73 = arith.constant 3.200000e+01 : f32
    %200 = vector.broadcast %cst_73 : f32 to vector<16x1xf32>
    %201 = arith.divf %199, %200 : vector<16x1xf32>
    %202 = vector.broadcast %194 : vector<16x1xf32> to vector<16x32xf32>
    %203 = arith.subf %188, %202 : vector<16x32xf32>
    %cst_74 = arith.constant 9.99999996E-13 : f32
    %204 = vector.broadcast %cst_74 : f32 to vector<16x1xf32>
    %205 = arith.addf %201, %204 : vector<16x1xf32>
    %206 = math.rsqrt %205 : vector<16x1xf32>
    %207 = vector.broadcast %206 : vector<16x1xf32> to vector<16x32xf32>
    %208 = arith.mulf %203, %207 : vector<16x32xf32>
    %209 = vector.broadcast %189 : vector<1x32xf32> to vector<16x32xf32>
    %210 = arith.mulf %208, %209 : vector<16x32xf32>
    %211 = vector.broadcast %190 : vector<1x32xf32> to vector<16x32xf32>
    %212 = arith.addf %210, %211 : vector<16x32xf32>
    %c0_75 = arith.constant 0 : index
    %c0_76 = arith.constant 0 : index
    %213 = vector.load %arg14[%c0_75, %c0_76] : memref<16x32xf32, #tpu.memory_space<vmem>>, vector<16x32xf32>
    tpu.vector_store %arg14[%c0_75, %c0_76], %212 {strides = array<i32>} : memref<16x32xf32, #tpu.memory_space<vmem>>, vector<16x32xf32>,
    return
  }
}

</mosaic_0001>

<llo_original>
// kernel: bert_skip_encoder.1
$region0: #{bert_skip_encoder.1}
  #allocation0 [shape = 'u32[]', space=smem, size = 0x4, offset = 0x4, fixed_abs, tag = 'smem constant byte address 0x4 - core index']
  #allocation1 [shape = 'u32[144,128]{1,0:T(1,128)}', space=vmem, size = 0x12000, scoped, tag = 'internal scratch']
  %s0 = inlined_call_operand.vmem [shape: f32[16,32], index: 0, kind: input, shape index: {}]
  %s1 = inlined_call_operand.vmem [shape: f32[16,16], index: 1, kind: input, shape index: {}]
  %s2 = inlined_call_operand.vmem [shape: f32[32,96], index: 2, kind: input, shape index: {}]
  %s3 = inlined_call_operand.vmem [shape: f32[1,96], index: 3, kind: input, shape index: {}]
  %s4 = inlined_call_operand.vmem [shape: f32[32,32], index: 4, kind: input, shape index: {}]
  %s5 = inlined_call_operand.vmem [shape: f32[1,32], index: 5, kind: input, shape index: {}]
  %s6 = inlined_call_operand.vmem [shape: f32[1,32], index: 6, kind: input, shape index: {}]
  %s7 = inlined_call_operand.vmem [shape: f32[1,32], index: 7, kind: input, shape index: {}]
  %s8 = inlined_call_operand.vmem [shape: f32[32,64], index: 8, kind: input, shape index: {}]
  %s9 = inlined_call_operand.vmem [shape: f32[1,64], index: 9, kind: input, shape index: {}]
  %s10 = inlined_call_operand.vmem [shape: f32[64,32], index: 10, kind: input, shape index: {}]
  %s11 = inlined_call_operand.vmem [shape: f32[1,32], index: 11, kind: input, shape index: {}]
  %s12 = inlined_call_operand.vmem [shape: f32[1,32], index: 12, kind: input, shape index: {}]
  %s13 = inlined_call_operand.vmem [shape: f32[1,32], index: 13, kind: input, shape index: {}]
  %s14 = inlined_call_operand.hbm [shape: f32[16,32], index: 14, kind: output, shape index: {}]
  %s15 = sld [smem:[#allocation0]]
  $region66: #{bert_skip_encoder.1} parent=0
    _
  %s17 = ssub.s32 1, %s15
  %s18 = scalar_select 0, %s17, %s15
  $region1: #{bert_skip_encoder.1} parent=0
    #allocation2 [shape = 'u8[8192]{0}', space=vmem, size = 0x2000, scoped, tag = 'output window, operand 0, single buffered']
    #allocation3 [shape = 's32[1]{0}', space=sflag, size = 0x4, scoped, tag = 'scoped memory for bert_skip_encoder.1']
    %19 = vsyncpa [#allocation3], 0
    // Predicated region
    $region2: #{bert_skip_encoder.1} parent=1 // pred_check
      _
    $region3: #{bert_skip_encoder.1} parent=1 // pred_check_branch
      %21 = sbr.rel (0) target = $region5
    $region4: #{bert_skip_encoder.1} parent=1 // pred_region
      _
    $region5: #{bert_skip_encoder.1} parent=1 // pred_fallthru
      _
    // Predicated region
    $region6: #{bert_skip_encoder.1} parent=1 // pred_check
      _
    $region7: #{bert_skip_encoder.1} parent=1 // pred_check_branch
      %23 = sbr.rel (0) target = $region9
    $region8: #{bert_skip_encoder.1} parent=1 // pred_region
      _
    $region9: #{bert_skip_encoder.1} parent=1 // pred_fallthru
      _
    // Predicated region
    $region10: #{bert_skip_encoder.1} parent=1 // pred_check
      _
    $region11: #{bert_skip_encoder.1} parent=1 // pred_check_branch
      %25 = sbr.rel (0) target = $region13
    $region12: #{bert_skip_encoder.1} parent=1 // pred_region
      _
    $region13: #{bert_skip_encoder.1} parent=1 // pred_fallthru
      _
    // Predicated region
    $region14: #{bert_skip_encoder.1} parent=1 // pred_check
      _
    $region15: #{bert_skip_encoder.1} parent=1 // pred_check_branch
      %27 = sbr.rel (0) target = $region17
    $region16: #{bert_skip_encoder.1} parent=1 // pred_region
      _
    $region17: #{bert_skip_encoder.1} parent=1 // pred_fallthru
      _
    // Predicated region
    $region18: #{bert_skip_encoder.1} parent=1 // pred_check
      _
    $region19: #{bert_skip_encoder.1} parent=1 // pred_check_branch
      %29 = sbr.rel (0) target = $region21
    $region20: #{bert_skip_encoder.1} parent=1 // pred_region
      _
    $region21: #{bert_skip_encoder.1} parent=1 // pred_fallthru
      _
    // Predicated region
    $region22: #{bert_skip_encoder.1} parent=1 // pred_check
      _
    $region23: #{bert_skip_encoder.1} parent=1 // pred_check_branch
      %31 = sbr.rel (0) target = $region25
    $region24: #{bert_skip_encoder.1} parent=1 // pred_region
      _
    $region25: #{bert_skip_encoder.1} parent=1 // pred_fallthru
      _
    // Predicated region
    $region26: #{bert_skip_encoder.1} parent=1 // pred_check
      _
    $region27: #{bert_skip_encoder.1} parent=1 // pred_check_branch
      %33 = sbr.rel (0) target = $region29
    $region28: #{bert_skip_encoder.1} parent=1 // pred_region
      _
    $region29: #{bert_skip_encoder.1} parent=1 // pred_fallthru
      _
    // Predicated region
    $region30: #{bert_skip_encoder.1} parent=1 // pred_check
      _
    $region31: #{bert_skip_encoder.1} parent=1 // pred_check_branch
      %35 = sbr.rel (0) target = $region33
    $region32: #{bert_skip_encoder.1} parent=1 // pred_region
      _
    $region33: #{bert_skip_encoder.1} parent=1 // pred_fallthru
      _
    // Predicated region
    $region34: #{bert_skip_encoder.1} parent=1 // pred_check
      _
    $region35: #{bert_skip_encoder.1} parent=1 // pred_check_branch
      %37 = sbr.rel (0) target = $region37
    $region36: #{bert_skip_encoder.1} parent=1 // pred_region
      _
    $region37: #{bert_skip_encoder.1} parent=1 // pred_fallthru
      _
    // Predicated region
    $region38: #{bert_skip_encoder.1} parent=1 // pred_check
      _
    $region39: #{bert_skip_encoder.1} parent=1 // pred_check_branch
      %39 = sbr.rel (0) target = $region41
    $region40: #{bert_skip_encoder.1} parent=1 // pred_region
      _
    $region41: #{bert_skip_encoder.1} parent=1 // pred_fallthru
      _
    // Predicated region
    $region42: #{bert_skip_encoder.1} parent=1 // pred_check
      _
    $region43: #{bert_skip_encoder.1} parent=1 // pred_check_branch
      %41 = sbr.rel (0) target = $region45
    $region44: #{bert_skip_encoder.1} parent=1 // pred_region
      _
    $region45: #{bert_skip_encoder.1} parent=1 // pred_fallthru
      _
    // Predicated region
    $region46: #{bert_skip_encoder.1} parent=1 // pred_check
      _
    $region47: #{bert_skip_encoder.1} parent=1 // pred_check_branch
      %43 = sbr.rel (0) target = $region49
    $region48: #{bert_skip_encoder.1} parent=1 // pred_region
      _
    $region49: #{bert_skip_encoder.1} parent=1 // pred_fallthru
      _
    // Predicated region
    $region50: #{bert_skip_encoder.1} parent=1 // pred_check
      _
    $region51: #{bert_skip_encoder.1} parent=1 // pred_check_branch
      %45 = sbr.rel (0) target = $region53
    $region52: #{bert_skip_encoder.1} parent=1 // pred_region
      _
    $region53: #{bert_skip_encoder.1} parent=1 // pred_fallthru
      _
    // Predicated region
    $region54: #{bert_skip_encoder.1} parent=1 // pred_check
      _
    $region55: #{bert_skip_encoder.1} parent=1 // pred_check_branch
      %47 = sbr.rel (0) target = $region57
    $region56: #{bert_skip_encoder.1} parent=1 // pred_region
      _
    $region57: #{bert_skip_encoder.1} parent=1 // pred_fallthru
      _
    %v48 = vld [vmem:[%s0] sm:$0xff]
    %v49 = vld [vmem:[%s0 + $0x8] sm:$0xff]
    %v50 = vld [vmem:[%s1] sm:$0xff]
    %v51 = vld [vmem:[%s1 + $0x8] sm:$0xff]
    %v52 = vld [vmem:[%s2] sm:$0xff]
    %v53 = vld [vmem:[%s2 + $0x8] sm:$0xff]
    %v54 = vld [vmem:[%s2 + $0x10] sm:$0xff]
    %v55 = vld [vmem:[%s2 + $0x18] sm:$0xff]
    %v56 = vld [vmem:[%s3] sm:$0x1]
    %v58 = vlaneseq
    %v59 = vshrl.u32 %v58, 7
    %v60 = vsub.s32 0, %v59
    %v61 = vrot.slane %v56, %v60
    %vm63 = vcmask 261120
    %v65 = vsel %vm63, %v48, 0
    %v68 = vsel %vm63, %v49, 0
    %70 = vmatprep.subr.mxu0 0.0
    %71 = vmatpush1.msra.mxu0 %v52
    %72 = vmatprep.subr.mxu0 0.0
    %73 = vmatpush1.msra.mxu0 %v53
    %74 = vmatprep.subr.mxu0 0.0
    %75 = vmatpush1.msra.mxu0 %v54
    %76 = vmatprep.subr.mxu0 0.0
    %77 = vmatpush1.msra.mxu0 %v55
    %78 = vmatprep.subr.mxu0 0.0
    %79 = vmatpush1.msra.mxu0 0.0
    %80 = vmatprep.subr.mxu0 0.0
    %81 = vmatpush1.msra.mxu0 0.0
    %82 = vmatprep.subr.mxu0 0.0
    %83 = vmatpush1.msra.mxu0 0.0
    %84 = vmatprep.subr.mxu0 0.0
    %85 = vmatpush1.msra.mxu0 0.0
    %86 = vmatprep.subr.mxu0 0.0
    %87 = vmatpush1.msra.mxu0 0.0
    %88 = vmatprep.subr.mxu0 0.0
    %89 = vmatpush1.msra.mxu0 0.0
    %90 = vmatprep.subr.mxu0 0.0
    %91 = vmatpush1.msra.mxu0 0.0
    %92 = vmatprep.subr.mxu0 0.0
    %93 = vmatpush1.msra.mxu0 0.0
    %94 = vmatprep.subr.mxu0 0.0
    %95 = vmatpush1.msra.mxu0 0.0
    %96 = vmatprep.subr.mxu0 0.0
    %97 = vmatpush1.msra.mxu0 0.0
    %98 = vmatprep.subr.mxu0 0.0
    %99 = vmatpush1.msra.mxu0 0.0
    %100 = vmatprep.subr.mxu0 0.0
    %101 = vmatpush1.msra.mxu0 0.0
    %102 = vmatprep.subr.mxu0 0.0
    %103 = vmatpush1.msra.mxu0 0.0
    %104 = vmatprep.subr.mxu0 0.0
    %105 = vmatpush1.msra.mxu0 0.0
    %106 = vmatprep.subr.mxu0 0.0
    %107 = vmatpush1.msra.mxu0 0.0
    %108 = vmatprep.subr.mxu0 0.0
    %109 = vmatpush1.msra.mxu0 0.0
    %110 = vmatprep.subr.mxu0 0.0
    %111 = vmatpush1.msra.mxu0 0.0
    %112 = vmatprep.subr.mxu0 0.0
    %113 = vmatpush1.msra.mxu0 0.0
    %114 = vmatprep.subr.mxu0 0.0
    %115 = vmatpush1.msra.mxu0 0.0
    %116 = vmatprep.subr.mxu0 0.0
    %117 = vmatpush1.msra.mxu0 0.0
    %118 = vmatprep.subr.mxu0 0.0
    %119 = vmatpush1.msra.mxu0 0.0
    %120 = vmatprep.subr.mxu0 0.0
    %121 = vmatpush1.msra.mxu0 0.0
    %122 = vmatprep.subr.mxu0 0.0
    %123 = vmatpush1.msra.mxu0 0.0
    %124 = vmatprep.subr.mxu0 0.0
    %125 = vmatpush1.msra.mxu0 0.0
    %126 = vmatprep.subr.mxu0 0.0
    %127 = vmatpush1.msra.mxu0 0.0
    %128 = vmatprep.subr.mxu0 0.0
    %129 = vmatpush1.msra.mxu0 0.0
    %130 = vmatprep.subr.mxu0 0.0
    %131 = vmatpush1.msra.mxu0 0.0
    %132 = vmatprep.subr.mxu0 0.0
    %133 = vmatpush1.msra.mxu0 0.0
    %134 = vmatprep.mubr.f32.mxu0 0.0
    %135 = vmatmul.mubr.f32.gmra.mrb[0].mxu0 %v65
    %v136 = vpop.f32.mrb[0].mxu0
    %v137 = vadd.f32 %v61, %v136
    %v138 = vpop.f32.mrb[0].mxu0
    %139 = vmatprep.mubr.f32.mxu0 0.0
    %140 = vmatmul.mubr.f32.gmra.mrb[0].mxu0 %v68
    %v141 = vpop.f32.mrb[0].mxu0
    %v142 = vadd.f32 %v61, %v141
    %v143 = vpop.f32.mrb[0].mxu0
    %144 = vdwg.mxu0
    %v145 = vlaneseq
    %v146 = vand.u32 %v145, 127
    %vm147 = vcmp.ge.s32.totalorder %v146, 0
    %vm148 = vcmp.lt.s32.totalorder %v146, 8
    %vm149 = vmand %vm147, %vm148
    %v150 = vsel %vm149, 1, 0
    %v151 = vcvt.s32.f32 %v150
    %v152 = vmul.f32 %v137, %v151
    %v153 = vmul.f32 %v142, %v151
    %156 = vrot.lane.b32.xlu0 %v137, 96
    %v157 = vpop.permute.xlu0 %156
    %158 = vrot.lane.b32.xlu0 %v142, 96
    %v159 = vpop.permute.xlu0 %158
    %v161 = vsel %vm63, %v152, 0
    %v164 = vsel %vm63, %v153, 0
    %v166 = vsel %vm63, %v157, 0
    %v168 = vsel %vm63, %v159, 0
    %170 = vmatprep.subr.mxu0 0.0
    %171 = vmatpush1.xpose.msra.mxu0 %v166
    %172 = vmatprep.subr.mxu0 0.0
    %173 = vmatpush1.xpose.msra.mxu0 %v168
    %174 = vmatprep.subr.mxu0 0.0
    %175 = vmatpush1.xpose.msra.mxu0 0.0
    %176 = vmatprep.subr.mxu0 0.0
    %177 = vmatpush1.xpose.msra.mxu0 0.0
    %178 = vmatprep.subr.mxu0 0.0
    %179 = vmatpush1.xpose.msra.mxu0 0.0
    %180 = vmatprep.subr.mxu0 0.0
    %181 = vmatpush1.xpose.msra.mxu0 0.0
    %182 = vmatprep.subr.mxu0 0.0
    %183 = vmatpush1.xpose.msra.mxu0 0.0
    %184 = vmatprep.subr.mxu0 0.0
    %185 = vmatpush1.xpose.msra.mxu0 0.0
    %186 = vmatprep.subr.mxu0 0.0
    %187 = vmatpush1.xpose.msra.mxu0 0.0
    %188 = vmatprep.subr.mxu0 0.0
    %189 = vmatpush1.xpose.msra.mxu0 0.0
    %190 = vmatprep.subr.mxu0 0.0
    %191 = vmatpush1.xpose.msra.mxu0 0.0
    %192 = vmatprep.subr.mxu0 0.0
    %193 = vmatpush1.xpose.msra.mxu0 0.0
    %194 = vmatprep.subr.mxu0 0.0
    %195 = vmatpush1.xpose.msra.mxu0 0.0
    %196 = vmatprep.subr.mxu0 0.0
    %197 = vmatpush1.xpose.msra.mxu0 0.0
    %198 = vmatprep.subr.mxu0 0.0
    %199 = vmatpush1.xpose.msra.mxu0 0.0
    %200 = vmatprep.subr.mxu0 0.0
    %201 = vmatpush1.xpose.msra.mxu0 0.0
    %202 = vmatprep.subr.mxu0 0.0
    %203 = vmatpush1.xpose.msra.mxu0 0.0
    %204 = vmatprep.subr.mxu0 0.0
    %205 = vmatpush1.xpose.msra.mxu0 0.0
    %206 = vmatprep.subr.mxu0 0.0
    %207 = vmatpush1.xpose.msra.mxu0 0.0
    %208 = vmatprep.subr.mxu0 0.0
    %209 = vmatpush1.xpose.msra.mxu0 0.0
    %210 = vmatprep.subr.mxu0 0.0
    %211 = vmatpush1.xpose.msra.mxu0 0.0
    %212 = vmatprep.subr.mxu0 0.0
    %213 = vmatpush1.xpose.msra.mxu0 0.0
    %214 = vmatprep.subr.mxu0 0.0
    %215 = vmatpush1.xpose.msra.mxu0 0.0
    %216 = vmatprep.subr.mxu0 0.0
    %217 = vmatpush1.xpose.msra.mxu0 0.0
    %218 = vmatprep.subr.mxu0 0.0
    %219 = vmatpush1.xpose.msra.mxu0 0.0
    %220 = vmatprep.subr.mxu0 0.0
    %221 = vmatpush1.xpose.msra.mxu0 0.0
    %222 = vmatprep.subr.mxu0 0.0
    %223 = vmatpush1.xpose.msra.mxu0 0.0
    %224 = vmatprep.subr.mxu0 0.0
    %225 = vmatpush1.xpose.msra.mxu0 0.0
    %226 = vmatprep.subr.mxu0 0.0
    %227 = vmatpush1.xpose.msra.mxu0 0.0
    %228 = vmatprep.subr.mxu0 0.0
    %229 = vmatpush1.xpose.msra.mxu0 0.0
    %230 = vmatprep.subr.mxu0 0.0
    %231 = vmatpush1.xpose.msra.mxu0 0.0
    %232 = vmatprep.subr.mxu0 0.0
    %233 = vmatpush1.xpose.msra.mxu0 0.0
    %234 = vmatprep.mubr.f32.mxu0 0.0
    %235 = vmatmul.mubr.f32.gmra.mrb[0].mxu0 %v161
    %v236 = vpop.f32.mrb[0].mxu0
    %v237 = vadd.f32 %v50, %v236
    %v238 = vpop.f32.mrb[0].mxu0
    %239 = vmatprep.mubr.f32.mxu0 0.0
    %240 = vmatmul.mubr.f32.gmra.mrb[0].mxu0 %v164
    %v241 = vpop.f32.mrb[0].mxu0
    %v242 = vadd.f32 %v51, %v241
    %v243 = vpop.f32.mrb[0].mxu0
    %244 = vdwg.mxu0
    %vm245 = vcmask 130048
    %v246 = vsel %vm245, %v237, -inf
    %247 = vmax.xlane.f32.xlu0 %v246
    %v248 = vpop.xlane.xlu0 %247
    %v249 = vsel %vm245, %v242, -inf
    %250 = vmax.xlane.f32.xlu0 %v249
    %v251 = vpop.xlane.xlu0 %250
    %v252 = vsub.f32 %v237, %v248
    %v253 = vsub.f32 %v242, %v251
    %v254 = vmul.f32 %v252, 1.442695
    %v255 = vpow.pop %v254
    %v256 = vmul.f32 %v253, 1.442695
    %v257 = vpow.pop %v256
    %v258 = vsel %vm245, %v255, 0.0
    %259 = vadd.xlane.f32.xlu0 %v258
    %v260 = vpop.xlane.xlu0 %259
    %v261 = vsel %vm245, %v257, 0.0
    %262 = vadd.xlane.f32.xlu0 %v261
    %v263 = vpop.xlane.xlu0 %262
    %v264 = vrcp.pop %v260
    %v265 = vmul.f32 %v255, %v264
    %v266 = vrcp.pop %v263
    %v267 = vmul.f32 %v257, %v266
    %268 = vrot.lane.b32.xlu0 %v137, 64
    %v269 = vpop.permute.xlu0 %268
    %270 = vrot.lane.b32.xlu0 %v142, 64
    %v271 = vpop.permute.xlu0 %270
    %v275 = vsel %vm245, %v265, 0
    %v278 = vsel %vm245, %v267, 0
    %280 = vmatprep.subr.mxu0 0.0
    %281 = vmatpush1.msra.mxu0 %v269
    %282 = vmatprep.subr.mxu0 0.0
    %283 = vmatpush1.msra.mxu0 %v271
    %284 = vmatprep.subr.mxu0 0.0
    %285 = vmatpush1.msra.mxu0 0.0
    %286 = vmatprep.subr.mxu0 0.0
    %287 = vmatpush1.msra.mxu0 0.0
    %288 = vmatprep.subr.mxu0 0.0
    %289 = vmatpush1.msra.mxu0 0.0
    %290 = vmatprep.subr.mxu0 0.0
    %291 = vmatpush1.msra.mxu0 0.0
    %292 = vmatprep.subr.mxu0 0.0
    %293 = vmatpush1.msra.mxu0 0.0
    %294 = vmatprep.subr.mxu0 0.0
    %295 = vmatpush1.msra.mxu0 0.0
    %296 = vmatprep.subr.mxu0 0.0
    %297 = vmatpush1.msra.mxu0 0.0
    %298 = vmatprep.subr.mxu0 0.0
    %299 = vmatpush1.msra.mxu0 0.0
    %300 = vmatprep.subr.mxu0 0.0
    %301 = vmatpush1.msra.mxu0 0.0
    %302 = vmatprep.subr.mxu0 0.0
    %303 = vmatpush1.msra.mxu0 0.0
    %304 = vmatprep.subr.mxu0 0.0
    %305 = vmatpush1.msra.mxu0 0.0
    %306 = vmatprep.subr.mxu0 0.0
    %307 = vmatpush1.msra.mxu0 0.0
    %308 = vmatprep.subr.mxu0 0.0
    %309 = vmatpush1.msra.mxu0 0.0
    %310 = vmatprep.subr.mxu0 0.0
    %311 = vmatpush1.msra.mxu0 0.0
    %312 = vmatprep.subr.mxu0 0.0
    %313 = vmatpush1.msra.mxu0 0.0
    %314 = vmatprep.subr.mxu0 0.0
    %315 = vmatpush1.msra.mxu0 0.0
    %316 = vmatprep.subr.mxu0 0.0
    %317 = vmatpush1.msra.mxu0 0.0
    %318 = vmatprep.subr.mxu0 0.0
    %319 = vmatpush1.msra.mxu0 0.0
    %320 = vmatprep.subr.mxu0 0.0
    %321 = vmatpush1.msra.mxu0 0.0
    %322 = vmatprep.subr.mxu0 0.0
    %323 = vmatpush1.msra.mxu0 0.0
    %324 = vmatprep.subr.mxu0 0.0
    %325 = vmatpush1.msra.mxu0 0.0
    %326 = vmatprep.subr.mxu0 0.0
    %327 = vmatpush1.msra.mxu0 0.0
    %328 = vmatprep.subr.mxu0 0.0
    %329 = vmatpush1.msra.mxu0 0.0
    %330 = vmatprep.subr.mxu0 0.0
    %331 = vmatpush1.msra.mxu0 0.0
    %332 = vmatprep.subr.mxu0 0.0
    %333 = vmatpush1.msra.mxu0 0.0
    %334 = vmatprep.subr.mxu0 0.0
    %335 = vmatpush1.msra.mxu0 0.0
    %336 = vmatprep.subr.mxu0 0.0
    %337 = vmatpush1.msra.mxu0 0.0
    %338 = vmatprep.subr.mxu0 0.0
    %339 = vmatpush1.msra.mxu0 0.0
    %340 = vmatprep.subr.mxu0 0.0
    %341 = vmatpush1.msra.mxu0 0.0
    %342 = vmatprep.subr.mxu0 0.0
    %343 = vmatpush1.msra.mxu0 0.0
    %344 = vmatprep.mubr.f32.mxu0 0.0
    %345 = vmatmul.mubr.f32.gmra.mrb[0].mxu0 %v275
    %v346 = vpop.f32.mrb[0].mxu0
    %v347 = vadd.f32 0.0, %v346
    %v348 = vpop.f32.mrb[0].mxu0
    %349 = vmatprep.mubr.f32.mxu0 0.0
    %350 = vmatmul.mubr.f32.gmra.mrb[0].mxu0 %v278
    %v351 = vpop.f32.mrb[0].mxu0
    %v352 = vadd.f32 0.0, %v351
    %v353 = vpop.f32.mrb[0].mxu0
    %354 = vdwg.mxu0
    %v355 = vmul.f32 %v347, %v151
    %v356 = vmul.f32 %v352, %v151
    %v357 = vadd.f32 %v355, 0.0
    %v358 = vadd.f32 %v356, 0.0
    %vm359 = vcmp.ge.s32.totalorder %v146, 8
    %vm360 = vcmp.lt.s32.totalorder %v146, 16
    %vm361 = vmand %vm359, %vm360
    %v362 = vsel %vm361, 1, 0
    %v363 = vcvt.s32.f32 %v362
    %v364 = vmul.f32 %v137, %v363
    %v365 = vmul.f32 %v142, %v363
    %v367 = vsel %vm63, %v364, 0
    %v370 = vsel %vm63, %v365, 0
    %372 = vmatprep.subr.mxu0 0.0
    %373 = vmatpush1.xpose.msra.mxu0 %v166
    %374 = vmatprep.subr.mxu0 0.0
    %375 = vmatpush1.xpose.msra.mxu0 %v168
    %376 = vmatprep.subr.mxu0 0.0
    %377 = vmatpush1.xpose.msra.mxu0 0.0
    %378 = vmatprep.subr.mxu0 0.0
    %379 = vmatpush1.xpose.msra.mxu0 0.0
    %380 = vmatprep.subr.mxu0 0.0
    %381 = vmatpush1.xpose.msra.mxu0 0.0
    %382 = vmatprep.subr.mxu0 0.0
    %383 = vmatpush1.xpose.msra.mxu0 0.0
    %384 = vmatprep.subr.mxu0 0.0
    %385 = vmatpush1.xpose.msra.mxu0 0.0
    %386 = vmatprep.subr.mxu0 0.0
    %387 = vmatpush1.xpose.msra.mxu0 0.0
    %388 = vmatprep.subr.mxu0 0.0
    %389 = vmatpush1.xpose.msra.mxu0 0.0
    %390 = vmatprep.subr.mxu0 0.0
    %391 = vmatpush1.xpose.msra.mxu0 0.0
    %392 = vmatprep.subr.mxu0 0.0
    %393 = vmatpush1.xpose.msra.mxu0 0.0
    %394 = vmatprep.subr.mxu0 0.0
    %395 = vmatpush1.xpose.msra.mxu0 0.0
    %396 = vmatprep.subr.mxu0 0.0
    %397 = vmatpush1.xpose.msra.mxu0 0.0
    %398 = vmatprep.subr.mxu0 0.0
    %399 = vmatpush1.xpose.msra.mxu0 0.0
    %400 = vmatprep.subr.mxu0 0.0
    %401 = vmatpush1.xpose.msra.mxu0 0.0
    %402 = vmatprep.subr.mxu0 0.0
    %403 = vmatpush1.xpose.msra.mxu0 0.0
    %404 = vmatprep.subr.mxu0 0.0
    %405 = vmatpush1.xpose.msra.mxu0 0.0
    %406 = vmatprep.subr.mxu0 0.0
    %407 = vmatpush1.xpose.msra.mxu0 0.0
    %408 = vmatprep.subr.mxu0 0.0
    %409 = vmatpush1.xpose.msra.mxu0 0.0
    %410 = vmatprep.subr.mxu0 0.0
    %411 = vmatpush1.xpose.msra.mxu0 0.0
    %412 = vmatprep.subr.mxu0 0.0
    %413 = vmatpush1.xpose.msra.mxu0 0.0
    %414 = vmatprep.subr.mxu0 0.0
    %415 = vmatpush1.xpose.msra.mxu0 0.0
    %416 = vmatprep.subr.mxu0 0.0
    %417 = vmatpush1.xpose.msra.mxu0 0.0
    %418 = vmatprep.subr.mxu0 0.0
    %419 = vmatpush1.xpose.msra.mxu0 0.0
    %420 = vmatprep.subr.mxu0 0.0
    %421 = vmatpush1.xpose.msra.mxu0 0.0
    %422 = vmatprep.subr.mxu0 0.0
    %423 = vmatpush1.xpose.msra.mxu0 0.0
    %424 = vmatprep.subr.mxu0 0.0
    %425 = vmatpush1.xpose.msra.mxu0 0.0
    %426 = vmatprep.subr.mxu0 0.0
    %427 = vmatpush1.xpose.msra.mxu0 0.0
    %428 = vmatprep.subr.mxu0 0.0
    %429 = vmatpush1.xpose.msra.mxu0 0.0
    %430 = vmatprep.subr.mxu0 0.0
    %431 = vmatpush1.xpose.msra.mxu0 0.0
    %432 = vmatprep.subr.mxu0 0.0
    %433 = vmatpush1.xpose.msra.mxu0 0.0
    %434 = vmatprep.subr.mxu0 0.0
    %435 = vmatpush1.xpose.msra.mxu0 0.0
    %436 = vmatprep.mubr.f32.mxu0 0.0
    %437 = vmatmul.mubr.f32.gmra.mrb[0].mxu0 %v367
    %v438 = vpop.f32.mrb[0].mxu0
    %v439 = vadd.f32 %v50, %v438
    %v440 = vpop.f32.mrb[0].mxu0
    %441 = vmatprep.mubr.f32.mxu0 0.0
    %442 = vmatmul.mubr.f32.gmra.mrb[0].mxu0 %v370
    %v443 = vpop.f32.mrb[0].mxu0
    %v444 = vadd.f32 %v51, %v443
    %v445 = vpop.f32.mrb[0].mxu0
    %446 = vdwg.mxu0
    %v447 = vsel %vm245, %v439, -inf
    %448 = vmax.xlane.f32.xlu0 %v447
    %v449 = vpop.xlane.xlu0 %448
    %v450 = vsel %vm245, %v444, -inf
    %451 = vmax.xlane.f32.xlu0 %v450
    %v452 = vpop.xlane.xlu0 %451
    %v453 = vsub.f32 %v439, %v449
    %v454 = vsub.f32 %v444, %v452
    %v455 = vmul.f32 %v453, 1.442695
    %v456 = vpow.pop %v455
    %v457 = vmul.f32 %v454, 1.442695
    %v458 = vpow.pop %v457
    %v459 = vsel %vm245, %v456, 0.0
    %460 = vadd.xlane.f32.xlu0 %v459
    %v461 = vpop.xlane.xlu0 %460
    %v462 = vsel %vm245, %v458, 0.0
    %463 = vadd.xlane.f32.xlu0 %v462
    %v464 = vpop.xlane.xlu0 %463
    %v465 = vrcp.pop %v461
    %v466 = vmul.f32 %v456, %v465
    %v467 = vrcp.pop %v464
    %v468 = vmul.f32 %v458, %v467
    %v470 = vsel %vm245, %v466, 0
    %v473 = vsel %vm245, %v468, 0
    %475 = vmatprep.subr.mxu0 0.0
    %476 = vmatpush1.msra.mxu0 %v269
    %477 = vmatprep.subr.mxu0 0.0
    %478 = vmatpush1.msra.mxu0 %v271
    %479 = vmatprep.subr.mxu0 0.0
    %480 = vmatpush1.msra.mxu0 0.0
    %481 = vmatprep.subr.mxu0 0.0
    %482 = vmatpush1.msra.mxu0 0.0
    %483 = vmatprep.subr.mxu0 0.0
    %484 = vmatpush1.msra.mxu0 0.0
    %485 = vmatprep.subr.mxu0 0.0
    %486 = vmatpush1.msra.mxu0 0.0
    %487 = vmatprep.subr.mxu0 0.0
    %488 = vmatpush1.msra.mxu0 0.0
    %489 = vmatprep.subr.mxu0 0.0
    %490 = vmatpush1.msra.mxu0 0.0
    %491 = vmatprep.subr.mxu0 0.0
    %492 = vmatpush1.msra.mxu0 0.0
    %493 = vmatprep.subr.mxu0 0.0
    %494 = vmatpush1.msra.mxu0 0.0
    %495 = vmatprep.subr.mxu0 0.0
    %496 = vmatpush1.msra.mxu0 0.0
    %497 = vmatprep.subr.mxu0 0.0
    %498 = vmatpush1.msra.mxu0 0.0
    %499 = vmatprep.subr.mxu0 0.0
    %500 = vmatpush1.msra.mxu0 0.0
    %501 = vmatprep.subr.mxu0 0.0
    %502 = vmatpush1.msra.mxu0 0.0
    %503 = vmatprep.subr.mxu0 0.0
    %504 = vmatpush1.msra.mxu0 0.0
    %505 = vmatprep.subr.mxu0 0.0
    %506 = vmatpush1.msra.mxu0 0.0
    %507 = vmatprep.subr.mxu0 0.0
    %508 = vmatpush1.msra.mxu0 0.0
    %509 = vmatprep.subr.mxu0 0.0
    %510 = vmatpush1.msra.mxu0 0.0
    %511 = vmatprep.subr.mxu0 0.0
    %512 = vmatpush1.msra.mxu0 0.0
    %513 = vmatprep.subr.mxu0 0.0
    %514 = vmatpush1.msra.mxu0 0.0
    %515 = vmatprep.subr.mxu0 0.0
    %516 = vmatpush1.msra.mxu0 0.0
    %517 = vmatprep.subr.mxu0 0.0
    %518 = vmatpush1.msra.mxu0 0.0
    %519 = vmatprep.subr.mxu0 0.0
    %520 = vmatpush1.msra.mxu0 0.0
    %521 = vmatprep.subr.mxu0 0.0
    %522 = vmatpush1.msra.mxu0 0.0
    %523 = vmatprep.subr.mxu0 0.0
    %524 = vmatpush1.msra.mxu0 0.0
    %525 = vmatprep.subr.mxu0 0.0
    %526 = vmatpush1.msra.mxu0 0.0
    %527 = vmatprep.subr.mxu0 0.0
    %528 = vmatpush1.msra.mxu0 0.0
    %529 = vmatprep.subr.mxu0 0.0
    %530 = vmatpush1.msra.mxu0 0.0
    %531 = vmatprep.subr.mxu0 0.0
    %532 = vmatpush1.msra.mxu0 0.0
    %533 = vmatprep.subr.mxu0 0.0
    %534 = vmatpush1.msra.mxu0 0.0
    %535 = vmatprep.subr.mxu0 0.0
    %536 = vmatpush1.msra.mxu0 0.0
    %537 = vmatprep.subr.mxu0 0.0
    %538 = vmatpush1.msra.mxu0 0.0
    %539 = vmatprep.mubr.f32.mxu0 0.0
    %540 = vmatmul.mubr.f32.gmra.mrb[0].mxu0 %v470
    %v541 = vpop.f32.mrb[0].mxu0
    %v542 = vadd.f32 0.0, %v541
    %v543 = vpop.f32.mrb[0].mxu0
    %544 = vmatprep.mubr.f32.mxu0 0.0
    %545 = vmatmul.mubr.f32.gmra.mrb[0].mxu0 %v473
    %v546 = vpop.f32.mrb[0].mxu0
    %v547 = vadd.f32 0.0, %v546
    %v548 = vpop.f32.mrb[0].mxu0
    %549 = vdwg.mxu0
    %v550 = vmul.f32 %v542, %v363
    %v551 = vmul.f32 %v547, %v363
    %v552 = vadd.f32 %v357, %v550
    %v553 = vadd.f32 %v358, %v551
    %vm554 = vcmp.ge.s32.totalorder %v146, 16
    %vm555 = vcmp.lt.s32.totalorder %v146, 24
    %vm556 = vmand %vm554, %vm555
    %v557 = vsel %vm556, 1, 0
    %v558 = vcvt.s32.f32 %v557
    %v559 = vmul.f32 %v137, %v558
    %v560 = vmul.f32 %v142, %v558
    %v562 = vsel %vm63, %v559, 0
    %v565 = vsel %vm63, %v560, 0
    %567 = vmatprep.subr.mxu0 0.0
    %568 = vmatpush1.xpose.msra.mxu0 %v166
    %569 = vmatprep.subr.mxu0 0.0
    %570 = vmatpush1.xpose.msra.mxu0 %v168
    %571 = vmatprep.subr.mxu0 0.0
    %572 = vmatpush1.xpose.msra.mxu0 0.0
    %573 = vmatprep.subr.mxu0 0.0
    %574 = vmatpush1.xpose.msra.mxu0 0.0
    %575 = vmatprep.subr.mxu0 0.0
    %576 = vmatpush1.xpose.msra.mxu0 0.0
    %577 = vmatprep.subr.mxu0 0.0
    %578 = vmatpush1.xpose.msra.mxu0 0.0
    %579 = vmatprep.subr.mxu0 0.0
    %580 = vmatpush1.xpose.msra.mxu0 0.0
    %581 = vmatprep.subr.mxu0 0.0
    %582 = vmatpush1.xpose.msra.mxu0 0.0
    %583 = vmatprep.subr.mxu0 0.0
    %584 = vmatpush1.xpose.msra.mxu0 0.0
    %585 = vmatprep.subr.mxu0 0.0
    %586 = vmatpush1.xpose.msra.mxu0 0.0
    %587 = vmatprep.subr.mxu0 0.0
    %588 = vmatpush1.xpose.msra.mxu0 0.0
    %589 = vmatprep.subr.mxu0 0.0
    %590 = vmatpush1.xpose.msra.mxu0 0.0
    %591 = vmatprep.subr.mxu0 0.0
    %592 = vmatpush1.xpose.msra.mxu0 0.0
    %593 = vmatprep.subr.mxu0 0.0
    %594 = vmatpush1.xpose.msra.mxu0 0.0
    %595 = vmatprep.subr.mxu0 0.0
    %596 = vmatpush1.xpose.msra.mxu0 0.0
    %597 = vmatprep.subr.mxu0 0.0
    %598 = vmatpush1.xpose.msra.mxu0 0.0
    %599 = vmatprep.subr.mxu0 0.0
    %600 = vmatpush1.xpose.msra.mxu0 0.0
    %601 = vmatprep.subr.mxu0 0.0
    %602 = vmatpush1.xpose.msra.mxu0 0.0
    %603 = vmatprep.subr.mxu0 0.0
    %604 = vmatpush1.xpose.msra.mxu0 0.0
    %605 = vmatprep.subr.mxu0 0.0
    %606 = vmatpush1.xpose.msra.mxu0 0.0
    %607 = vmatprep.subr.mxu0 0.0
    %608 = vmatpush1.xpose.msra.mxu0 0.0
    %609 = vmatprep.subr.mxu0 0.0
    %610 = vmatpush1.xpose.msra.mxu0 0.0
    %611 = vmatprep.subr.mxu0 0.0
    %612 = vmatpush1.xpose.msra.mxu0 0.0
    %613 = vmatprep.subr.mxu0 0.0
    %614 = vmatpush1.xpose.msra.mxu0 0.0
    %615 = vmatprep.subr.mxu0 0.0
    %616 = vmatpush1.xpose.msra.mxu0 0.0
    %617 = vmatprep.subr.mxu0 0.0
    %618 = vmatpush1.xpose.msra.mxu0 0.0
    %619 = vmatprep.subr.mxu0 0.0
    %620 = vmatpush1.xpose.msra.mxu0 0.0
    %621 = vmatprep.subr.mxu0 0.0
    %622 = vmatpush1.xpose.msra.mxu0 0.0
    %623 = vmatprep.subr.mxu0 0.0
    %624 = vmatpush1.xpose.msra.mxu0 0.0
    %625 = vmatprep.subr.mxu0 0.0
    %626 = vmatpush1.xpose.msra.mxu0 0.0
    %627 = vmatprep.subr.mxu0 0.0
    %628 = vmatpush1.xpose.msra.mxu0 0.0
    %629 = vmatprep.subr.mxu0 0.0
    %630 = vmatpush1.xpose.msra.mxu0 0.0
    %631 = vmatprep.mubr.f32.mxu0 0.0
    %632 = vmatmul.mubr.f32.gmra.mrb[0].mxu0 %v562
    %v633 = vpop.f32.mrb[0].mxu0
    %v634 = vadd.f32 %v50, %v633
    %v635 = vpop.f32.mrb[0].mxu0
    %636 = vmatprep.mubr.f32.mxu0 0.0
    %637 = vmatmul.mubr.f32.gmra.mrb[0].mxu0 %v565
    %v638 = vpop.f32.mrb[0].mxu0
    %v639 = vadd.f32 %v51, %v638
    %v640 = vpop.f32.mrb[0].mxu0
    %641 = vdwg.mxu0
    %v642 = vsel %vm245, %v634, -inf
    %643 = vmax.xlane.f32.xlu0 %v642
    %v644 = vpop.xlane.xlu0 %643
    %v645 = vsel %vm245, %v639, -inf
    %646 = vmax.xlane.f32.xlu0 %v645
    %v647 = vpop.xlane.xlu0 %646
    %v648 = vsub.f32 %v634, %v644
    %v649 = vsub.f32 %v639, %v647
    %v650 = vmul.f32 %v648, 1.442695
    %v651 = vpow.pop %v650
    %v652 = vmul.f32 %v649, 1.442695
    %v653 = vpow.pop %v652
    %v654 = vsel %vm245, %v651, 0.0
    %655 = vadd.xlane.f32.xlu0 %v654
    %v656 = vpop.xlane.xlu0 %655
    %v657 = vsel %vm245, %v653, 0.0
    %658 = vadd.xlane.f32.xlu0 %v657
    %v659 = vpop.xlane.xlu0 %658
    %v660 = vrcp.pop %v656
    %v661 = vmul.f32 %v651, %v660
    %v662 = vrcp.pop %v659
    %v663 = vmul.f32 %v653, %v662
    %v665 = vsel %vm245, %v661, 0
    %v668 = vsel %vm245, %v663, 0
    %670 = vmatprep.subr.mxu0 0.0
    %671 = vmatpush1.msra.mxu0 %v269
    %672 = vmatprep.subr.mxu0 0.0
    %673 = vmatpush1.msra.mxu0 %v271
    %674 = vmatprep.subr.mxu0 0.0
    %675 = vmatpush1.msra.mxu0 0.0
    %676 = vmatprep.subr.mxu0 0.0
    %677 = vmatpush1.msra.mxu0 0.0
    %678 = vmatprep.subr.mxu0 0.0
    %679 = vmatpush1.msra.mxu0 0.0
    %680 = vmatprep.subr.mxu0 0.0
    %681 = vmatpush1.msra.mxu0 0.0
    %682 = vmatprep.subr.mxu0 0.0
    %683 = vmatpush1.msra.mxu0 0.0
    %684 = vmatprep.subr.mxu0 0.0
    %685 = vmatpush1.msra.mxu0 0.0
    %686 = vmatprep.subr.mxu0 0.0
    %687 = vmatpush1.msra.mxu0 0.0
    %688 = vmatprep.subr.mxu0 0.0
    %689 = vmatpush1.msra.mxu0 0.0
    %690 = vmatprep.subr.mxu0 0.0
    %691 = vmatpush1.msra.mxu0 0.0
    %692 = vmatprep.subr.mxu0 0.0
    %693 = vmatpush1.msra.mxu0 0.0
    %694 = vmatprep.subr.mxu0 0.0
    %695 = vmatpush1.msra.mxu0 0.0
    %696 = vmatprep.subr.mxu0 0.0
    %697 = vmatpush1.msra.mxu0 0.0
    %698 = vmatprep.subr.mxu0 0.0
    %699 = vmatpush1.msra.mxu0 0.0
    %700 = vmatprep.subr.mxu0 0.0
    %701 = vmatpush1.msra.mxu0 0.0
    %702 = vmatprep.subr.mxu0 0.0
    %703 = vmatpush1.msra.mxu0 0.0
    %704 = vmatprep.subr.mxu0 0.0
    %705 = vmatpush1.msra.mxu0 0.0
    %706 = vmatprep.subr.mxu0 0.0
    %707 = vmatpush1.msra.mxu0 0.0
    %708 = vmatprep.subr.mxu0 0.0
    %709 = vmatpush1.msra.mxu0 0.0
    %710 = vmatprep.subr.mxu0 0.0
    %711 = vmatpush1.msra.mxu0 0.0
    %712 = vmatprep.subr.mxu0 0.0
    %713 = vmatpush1.msra.mxu0 0.0
    %714 = vmatprep.subr.mxu0 0.0
    %715 = vmatpush1.msra.mxu0 0.0
    %716 = vmatprep.subr.mxu0 0.0
    %717 = vmatpush1.msra.mxu0 0.0
    %718 = vmatprep.subr.mxu0 0.0
    %719 = vmatpush1.msra.mxu0 0.0
    %720 = vmatprep.subr.mxu0 0.0
    %721 = vmatpush1.msra.mxu0 0.0
    %722 = vmatprep.subr.mxu0 0.0
    %723 = vmatpush1.msra.mxu0 0.0
    %724 = vmatprep.subr.mxu0 0.0
    %725 = vmatpush1.msra.mxu0 0.0
    %726 = vmatprep.subr.mxu0 0.0
    %727 = vmatpush1.msra.mxu0 0.0
    %728 = vmatprep.subr.mxu0 0.0
    %729 = vmatpush1.msra.mxu0 0.0
    %730 = vmatprep.subr.mxu0 0.0
    %731 = vmatpush1.msra.mxu0 0.0
    %732 = vmatprep.subr.mxu0 0.0
    %733 = vmatpush1.msra.mxu0 0.0
    %734 = vmatprep.mubr.f32.mxu0 0.0
    %735 = vmatmul.mubr.f32.gmra.mrb[0].mxu0 %v665
    %v736 = vpop.f32.mrb[0].mxu0
    %v737 = vadd.f32 0.0, %v736
    %v738 = vpop.f32.mrb[0].mxu0
    %739 = vmatprep.mubr.f32.mxu0 0.0
    %740 = vmatmul.mubr.f32.gmra.mrb[0].mxu0 %v668
    %v741 = vpop.f32.mrb[0].mxu0
    %v742 = vadd.f32 0.0, %v741
    %v743 = vpop.f32.mrb[0].mxu0
    %744 = vdwg.mxu0
    %v745 = vmul.f32 %v737, %v558
    %v746 = vmul.f32 %v742, %v558
    %v747 = vadd.f32 %v552, %v745
    %v748 = vadd.f32 %v553, %v746
    %vm749 = vcmp.ge.s32.totalorder %v146, 24
    %vm750 = vcmp.lt.s32.totalorder %v146, 32
    %vm751 = vmand %vm749, %vm750
    %v752 = vsel %vm751, 1, 0
    %v753 = vcvt.s32.f32 %v752
    %v754 = vmul.f32 %v137, %v753
    %v755 = vmul.f32 %v142, %v753
    %v757 = vsel %vm63, %v754, 0
    %v760 = vsel %vm63, %v755, 0
    %762 = vmatprep.subr.mxu0 0.0
    %763 = vmatpush1.xpose.msra.mxu0 %v166
    %764 = vmatprep.subr.mxu0 0.0
    %765 = vmatpush1.xpose.msra.mxu0 %v168
    %766 = vmatprep.subr.mxu0 0.0
    %767 = vmatpush1.xpose.msra.mxu0 0.0
    %768 = vmatprep.subr.mxu0 0.0
    %769 = vmatpush1.xpose.msra.mxu0 0.0
    %770 = vmatprep.subr.mxu0 0.0
    %771 = vmatpush1.xpose.msra.mxu0 0.0
    %772 = vmatprep.subr.mxu0 0.0
    %773 = vmatpush1.xpose.msra.mxu0 0.0
    %774 = vmatprep.subr.mxu0 0.0
    %775 = vmatpush1.xpose.msra.mxu0 0.0
    %776 = vmatprep.subr.mxu0 0.0
    %777 = vmatpush1.xpose.msra.mxu0 0.0
    %778 = vmatprep.subr.mxu0 0.0
    %779 = vmatpush1.xpose.msra.mxu0 0.0
    %780 = vmatprep.subr.mxu0 0.0
    %781 = vmatpush1.xpose.msra.mxu0 0.0
    %782 = vmatprep.subr.mxu0 0.0
    %783 = vmatpush1.xpose.msra.mxu0 0.0
    %784 = vmatprep.subr.mxu0 0.0
    %785 = vmatpush1.xpose.msra.mxu0 0.0
    %786 = vmatprep.subr.mxu0 0.0
    %787 = vmatpush1.xpose.msra.mxu0 0.0
    %788 = vmatprep.subr.mxu0 0.0
    %789 = vmatpush1.xpose.msra.mxu0 0.0
    %790 = vmatprep.subr.mxu0 0.0
    %791 = vmatpush1.xpose.msra.mxu0 0.0
    %792 = vmatprep.subr.mxu0 0.0
    %793 = vmatpush1.xpose.msra.mxu0 0.0
    %794 = vmatprep.subr.mxu0 0.0
    %795 = vmatpush1.xpose.msra.mxu0 0.0
    %796 = vmatprep.subr.mxu0 0.0
    %797 = vmatpush1.xpose.msra.mxu0 0.0
    %798 = vmatprep.subr.mxu0 0.0
    %799 = vmatpush1.xpose.msra.mxu0 0.0
    %800 = vmatprep.subr.mxu0 0.0
    %801 = vmatpush1.xpose.msra.mxu0 0.0
    %802 = vmatprep.subr.mxu0 0.0
    %803 = vmatpush1.xpose.msra.mxu0 0.0
    %804 = vmatprep.subr.mxu0 0.0
    %805 = vmatpush1.xpose.msra.mxu0 0.0
    %806 = vmatprep.subr.mxu0 0.0
    %807 = vmatpush1.xpose.msra.mxu0 0.0
    %808 = vmatprep.subr.mxu0 0.0
    %809 = vmatpush1.xpose.msra.mxu0 0.0
    %810 = vmatprep.subr.mxu0 0.0
    %811 = vmatpush1.xpose.msra.mxu0 0.0
    %812 = vmatprep.subr.mxu0 0.0
    %813 = vmatpush1.xpose.msra.mxu0 0.0
    %814 = vmatprep.subr.mxu0 0.0
    %815 = vmatpush1.xpose.msra.mxu0 0.0
    %816 = vmatprep.subr.mxu0 0.0
    %817 = vmatpush1.xpose.msra.mxu0 0.0
    %818 = vmatprep.subr.mxu0 0.0
    %819 = vmatpush1.xpose.msra.mxu0 0.0
    %820 = vmatprep.subr.mxu0 0.0
    %821 = vmatpush1.xpose.msra.mxu0 0.0
    %822 = vmatprep.subr.mxu0 0.0
    %823 = vmatpush1.xpose.msra.mxu0 0.0
    %824 = vmatprep.subr.mxu0 0.0
    %825 = vmatpush1.xpose.msra.mxu0 0.0
    %826 = vmatprep.mubr.f32.mxu0 0.0
    %827 = vmatmul.mubr.f32.gmra.mrb[0].mxu0 %v757
    %v828 = vpop.f32.mrb[0].mxu0
    %v829 = vadd.f32 %v50, %v828
    %v830 = vpop.f32.mrb[0].mxu0
    %831 = vmatprep.mubr.f32.mxu0 0.0
    %832 = vmatmul.mubr.f32.gmra.mrb[0].mxu0 %v760
    %v833 = vpop.f32.mrb[0].mxu0
    %v834 = vadd.f32 %v51, %v833
    %v835 = vpop.f32.mrb[0].mxu0
    %836 = vdwg.mxu0
    %v837 = vsel %vm245, %v829, -inf
    %838 = vmax.xlane.f32.xlu0 %v837
    %v839 = vpop.xlane.xlu0 %838
    %v840 = vsel %vm245, %v834, -inf
    %841 = vmax.xlane.f32.xlu0 %v840
    %v842 = vpop.xlane.xlu0 %841
    %v843 = vsub.f32 %v829, %v839
    %v844 = vsub.f32 %v834, %v842
    %v845 = vmul.f32 %v843, 1.442695
    %v846 = vpow.pop %v845
    %v847 = vmul.f32 %v844, 1.442695
    %v848 = vpow.pop %v847
    %v849 = vsel %vm245, %v846, 0.0
    %850 = vadd.xlane.f32.xlu0 %v849
    %v851 = vpop.xlane.xlu0 %850
    %v852 = vsel %vm245, %v848, 0.0
    %853 = vadd.xlane.f32.xlu0 %v852
    %v854 = vpop.xlane.xlu0 %853
    %v855 = vrcp.pop %v851
    %v856 = vmul.f32 %v846, %v855
    %v857 = vrcp.pop %v854
    %v858 = vmul.f32 %v848, %v857
    %v860 = vsel %vm245, %v856, 0
    %v863 = vsel %vm245, %v858, 0
    %865 = vmatprep.subr.mxu0 0.0
    %866 = vmatpush1.msra.mxu0 %v269
    %867 = vmatprep.subr.mxu0 0.0
    %868 = vmatpush1.msra.mxu0 %v271
    %869 = vmatprep.subr.mxu0 0.0
    %870 = vmatpush1.msra.mxu0 0.0
    %871 = vmatprep.subr.mxu0 0.0
    %872 = vmatpush1.msra.mxu0 0.0
    %873 = vmatprep.subr.mxu0 0.0
    %874 = vmatpush1.msra.mxu0 0.0
    %875 = vmatprep.subr.mxu0 0.0
    %876 = vmatpush1.msra.mxu0 0.0
    %877 = vmatprep.subr.mxu0 0.0
    %878 = vmatpush1.msra.mxu0 0.0
    %879 = vmatprep.subr.mxu0 0.0
    %880 = vmatpush1.msra.mxu0 0.0
    %881 = vmatprep.subr.mxu0 0.0
    %882 = vmatpush1.msra.mxu0 0.0
    %883 = vmatprep.subr.mxu0 0.0
    %884 = vmatpush1.msra.mxu0 0.0
    %885 = vmatprep.subr.mxu0 0.0
    %886 = vmatpush1.msra.mxu0 0.0
    %887 = vmatprep.subr.mxu0 0.0
    %888 = vmatpush1.msra.mxu0 0.0
    %889 = vmatprep.subr.mxu0 0.0
    %890 = vmatpush1.msra.mxu0 0.0
    %891 = vmatprep.subr.mxu0 0.0
    %892 = vmatpush1.msra.mxu0 0.0
    %893 = vmatprep.subr.mxu0 0.0
    %894 = vmatpush1.msra.mxu0 0.0
    %895 = vmatprep.subr.mxu0 0.0
    %896 = vmatpush1.msra.mxu0 0.0
    %897 = vmatprep.subr.mxu0 0.0
    %898 = vmatpush1.msra.mxu0 0.0
    %899 = vmatprep.subr.mxu0 0.0
    %900 = vmatpush1.msra.mxu0 0.0
    %901 = vmatprep.subr.mxu0 0.0
    %902 = vmatpush1.msra.mxu0 0.0
    %903 = vmatprep.subr.mxu0 0.0
    %904 = vmatpush1.msra.mxu0 0.0
    %905 = vmatprep.subr.mxu0 0.0
    %906 = vmatpush1.msra.mxu0 0.0
    %907 = vmatprep.subr.mxu0 0.0
    %908 = vmatpush1.msra.mxu0 0.0
    %909 = vmatprep.subr.mxu0 0.0
    %910 = vmatpush1.msra.mxu0 0.0
    %911 = vmatprep.subr.mxu0 0.0
    %912 = vmatpush1.msra.mxu0 0.0
    %913 = vmatprep.subr.mxu0 0.0
    %914 = vmatpush1.msra.mxu0 0.0
    %915 = vmatprep.subr.mxu0 0.0
    %916 = vmatpush1.msra.mxu0 0.0
    %917 = vmatprep.subr.mxu0 0.0
    %918 = vmatpush1.msra.mxu0 0.0
    %919 = vmatprep.subr.mxu0 0.0
    %920 = vmatpush1.msra.mxu0 0.0
    %921 = vmatprep.subr.mxu0 0.0
    %922 = vmatpush1.msra.mxu0 0.0
    %923 = vmatprep.subr.mxu0 0.0
    %924 = vmatpush1.msra.mxu0 0.0
    %925 = vmatprep.subr.mxu0 0.0
    %926 = vmatpush1.msra.mxu0 0.0
    %927 = vmatprep.subr.mxu0 0.0
    %928 = vmatpush1.msra.mxu0 0.0
    %929 = vmatprep.mubr.f32.mxu0 0.0
    %930 = vmatmul.mubr.f32.gmra.mrb[0].mxu0 %v860
    %v931 = vpop.f32.mrb[0].mxu0
    %v932 = vadd.f32 0.0, %v931
    %v933 = vpop.f32.mrb[0].mxu0
    %934 = vmatprep.mubr.f32.mxu0 0.0
    %935 = vmatmul.mubr.f32.gmra.mrb[0].mxu0 %v863
    %v936 = vpop.f32.mrb[0].mxu0
    %v937 = vadd.f32 0.0, %v936
    %v938 = vpop.f32.mrb[0].mxu0
    %939 = vdwg.mxu0
    %v940 = vmul.f32 %v932, %v753
    %v941 = vmul.f32 %v937, %v753
    %v942 = vadd.f32 %v747, %v940
    %v943 = vadd.f32 %v748, %v941
    %v944 = vld [vmem:[%s4] sm:$0xff]
    %v945 = vld [vmem:[%s4 + $0x8] sm:$0xff]
    %v946 = vld [vmem:[%s4 + $0x10] sm:$0xff]
    %v947 = vld [vmem:[%s4 + $0x18] sm:$0xff]
    %v948 = vld [vmem:[%s5] sm:$0x1]
    %v950 = vlaneseq
    %v951 = vshrl.u32 %v950, 7
    %v952 = vsub.s32 0, %v951
    %v953 = vrot.slane %v948, %v952
    %v956 = vsel %vm63, %v942, 0
    %v959 = vsel %vm63, %v943, 0
    %961 = vmatprep.subr.mxu0 0.0
    %962 = vmatpush1.msra.mxu0 %v944
    %963 = vmatprep.subr.mxu0 0.0
    %964 = vmatpush1.msra.mxu0 %v945
    %965 = vmatprep.subr.mxu0 0.0
    %966 = vmatpush1.msra.mxu0 %v946
    %967 = vmatprep.subr.mxu0 0.0
    %968 = vmatpush1.msra.mxu0 %v947
    %969 = vmatprep.subr.mxu0 0.0
    %970 = vmatpush1.msra.mxu0 0.0
    %971 = vmatprep.subr.mxu0 0.0
    %972 = vmatpush1.msra.mxu0 0.0
    %973 = vmatprep.subr.mxu0 0.0
    %974 = vmatpush1.msra.mxu0 0.0
    %975 = vmatprep.subr.mxu0 0.0
    %976 = vmatpush1.msra.mxu0 0.0
    %977 = vmatprep.subr.mxu0 0.0
    %978 = vmatpush1.msra.mxu0 0.0
    %979 = vmatprep.subr.mxu0 0.0
    %980 = vmatpush1.msra.mxu0 0.0
    %981 = vmatprep.subr.mxu0 0.0
    %982 = vmatpush1.msra.mxu0 0.0
    %983 = vmatprep.subr.mxu0 0.0
    %984 = vmatpush1.msra.mxu0 0.0
    %985 = vmatprep.subr.mxu0 0.0
    %986 = vmatpush1.msra.mxu0 0.0
    %987 = vmatprep.subr.mxu0 0.0
    %988 = vmatpush1.msra.mxu0 0.0
    %989 = vmatprep.subr.mxu0 0.0
    %990 = vmatpush1.msra.mxu0 0.0
    %991 = vmatprep.subr.mxu0 0.0
    %992 = vmatpush1.msra.mxu0 0.0
    %993 = vmatprep.subr.mxu0 0.0
    %994 = vmatpush1.msra.mxu0 0.0
    %995 = vmatprep.subr.mxu0 0.0
    %996 = vmatpush1.msra.mxu0 0.0
    %997 = vmatprep.subr.mxu0 0.0
    %998 = vmatpush1.msra.mxu0 0.0
    %999 = vmatprep.subr.mxu0 0.0
    %1000 = vmatpush1.msra.mxu0 0.0
    %1001 = vmatprep.subr.mxu0 0.0
    %1002 = vmatpush1.msra.mxu0 0.0
    %1003 = vmatprep.subr.mxu0 0.0
    %1004 = vmatpush1.msra.mxu0 0.0
    %1005 = vmatprep.subr.mxu0 0.0
    %1006 = vmatpush1.msra.mxu0 0.0
    %1007 = vmatprep.subr.mxu0 0.0
    %1008 = vmatpush1.msra.mxu0 0.0
    %1009 = vmatprep.subr.mxu0 0.0
    %1010 = vmatpush1.msra.mxu0 0.0
    %1011 = vmatprep.subr.mxu0 0.0
    %1012 = vmatpush1.msra.mxu0 0.0
    %1013 = vmatprep.subr.mxu0 0.0
    %1014 = vmatpush1.msra.mxu0 0.0
    %1015 = vmatprep.subr.mxu0 0.0
    %1016 = vmatpush1.msra.mxu0 0.0
    %1017 = vmatprep.subr.mxu0 0.0
    %1018 = vmatpush1.msra.mxu0 0.0
    %1019 = vmatprep.subr.mxu0 0.0
    %1020 = vmatpush1.msra.mxu0 0.0
    %1021 = vmatprep.subr.mxu0 0.0
    %1022 = vmatpush1.msra.mxu0 0.0
    %1023 = vmatprep.subr.mxu0 0.0
    %1024 = vmatpush1.msra.mxu0 0.0
    %1025 = vmatprep.mubr.f32.mxu0 0.0
    %1026 = vmatmul.mubr.f32.gmra.mrb[0].mxu0 %v956
    %v1027 = vpop.f32.mrb[0].mxu0
    %v1028 = vadd.f32 %v953, %v1027
    %v1029 = vpop.f32.mrb[0].mxu0
    %1030 = vmatprep.mubr.f32.mxu0 0.0
    %1031 = vmatmul.mubr.f32.gmra.mrb[0].mxu0 %v959
    %v1032 = vpop.f32.mrb[0].mxu0
    %v1033 = vadd.f32 %v953, %v1032
    %v1034 = vpop.f32.mrb[0].mxu0
    %1035 = vdwg.mxu0
    %v1036 = vadd.f32 %v1028, %v48
    %v1037 = vadd.f32 %v1033, %v49
    %v1038 = vld [vmem:[%s6] sm:$0x1]
    %v1039 = vld [vmem:[%s7] sm:$0x1]
    %v1040 = vsel %vm63, %v1036, 0.0
    %1041 = vadd.xlane.f32.xlu0 %v1040
    %v1042 = vpop.xlane.xlu0 %1041
    %v1043 = vsel %vm63, %v1037, 0.0
    %1044 = vadd.xlane.f32.xlu0 %v1043
    %v1045 = vpop.xlane.xlu0 %1044
    %v1046 = vrcp.pop 32.0
    %v1047 = vmul.f32 %v1042, %v1046
    %v1048 = vmul.f32 %v1045, %v1046
    %v1049 = vsub.f32 %v1036, %v1047
    %v1050 = vsub.f32 %v1037, %v1048
    %v1051 = vmul.f32 %v1049, %v1049
    %v1052 = vmul.f32 %v1050, %v1050
    %v1053 = vsel %vm63, %v1051, 0.0
    %1054 = vadd.xlane.f32.xlu0 %v1053
    %v1055 = vpop.xlane.xlu0 %1054
    %v1056 = vsel %vm63, %v1052, 0.0
    %1057 = vadd.xlane.f32.xlu0 %v1056
    %v1058 = vpop.xlane.xlu0 %1057
    %v1059 = vmul.f32 %v1055, %v1046
    %v1060 = vmul.f32 %v1058, %v1046
    %v1061 = vadd.f32 %v1059, 1e-12
    %v1062 = vadd.f32 %v1060, 1e-12
    %v1063 = vrsqrt.pop %v1061
    %v1064 = vrsqrt.pop %v1062
    %v1065 = vmul.f32 %v1049, %v1063
    %v1066 = vmul.f32 %v1050, %v1064
    %v1068 = vlaneseq
    %v1069 = vshrl.u32 %v1068, 7
    %v1070 = vsub.s32 0, %v1069
    %v1071 = vrot.slane %v1038, %v1070
    %v1073 = vmul.f32 %v1065, %v1071
    %v1074 = vmul.f32 %v1066, %v1071
    %v1076 = vlaneseq
    %v1077 = vshrl.u32 %v1076, 7
    %v1078 = vsub.s32 0, %v1077
    %v1079 = vrot.slane %v1039, %v1078
    %v1081 = vadd.f32 %v1073, %v1079
    %v1082 = vadd.f32 %v1074, %v1079
    %v1083 = vld [vmem:[%s8] sm:$0xff]
    %v1084 = vld [vmem:[%s8 + $0x8] sm:$0xff]
    %v1085 = vld [vmem:[%s8 + $0x10] sm:$0xff]
    %v1086 = vld [vmem:[%s8 + $0x18] sm:$0xff]
    %v1087 = vld [vmem:[%s9] sm:$0x1]
    %v1089 = vlaneseq
    %v1090 = vshrl.u32 %v1089, 7
    %v1091 = vsub.s32 0, %v1090
    %v1092 = vrot.slane %v1087, %v1091
    %v1095 = vsel %vm63, %v1081, 0
    %v1098 = vsel %vm63, %v1082, 0
    %1100 = vmatprep.subr.mxu0 0.0
    %1101 = vmatpush1.msra.mxu0 %v1083
    %1102 = vmatprep.subr.mxu0 0.0
    %1103 = vmatpush1.msra.mxu0 %v1084
    %1104 = vmatprep.subr.mxu0 0.0
    %1105 = vmatpush1.msra.mxu0 %v1085
    %1106 = vmatprep.subr.mxu0 0.0
    %1107 = vmatpush1.msra.mxu0 %v1086
    %1108 = vmatprep.subr.mxu0 0.0
    %1109 = vmatpush1.msra.mxu0 0.0
    %1110 = vmatprep.subr.mxu0 0.0
    %1111 = vmatpush1.msra.mxu0 0.0
    %1112 = vmatprep.subr.mxu0 0.0
    %1113 = vmatpush1.msra.mxu0 0.0
    %1114 = vmatprep.subr.mxu0 0.0
    %1115 = vmatpush1.msra.mxu0 0.0
    %1116 = vmatprep.subr.mxu0 0.0
    %1117 = vmatpush1.msra.mxu0 0.0
    %1118 = vmatprep.subr.mxu0 0.0
    %1119 = vmatpush1.msra.mxu0 0.0
    %1120 = vmatprep.subr.mxu0 0.0
    %1121 = vmatpush1.msra.mxu0 0.0
    %1122 = vmatprep.subr.mxu0 0.0
    %1123 = vmatpush1.msra.mxu0 0.0
    %1124 = vmatprep.subr.mxu0 0.0
    %1125 = vmatpush1.msra.mxu0 0.0
    %1126 = vmatprep.subr.mxu0 0.0
    %1127 = vmatpush1.msra.mxu0 0.0
    %1128 = vmatprep.subr.mxu0 0.0
    %1129 = vmatpush1.msra.mxu0 0.0
    %1130 = vmatprep.subr.mxu0 0.0
    %1131 = vmatpush1.msra.mxu0 0.0
    %1132 = vmatprep.subr.mxu0 0.0
    %1133 = vmatpush1.msra.mxu0 0.0
    %1134 = vmatprep.subr.mxu0 0.0
    %1135 = vmatpush1.msra.mxu0 0.0
    %1136 = vmatprep.subr.mxu0 0.0
    %1137 = vmatpush1.msra.mxu0 0.0
    %1138 = vmatprep.subr.mxu0 0.0
    %1139 = vmatpush1.msra.mxu0 0.0
    %1140 = vmatprep.subr.mxu0 0.0
    %1141 = vmatpush1.msra.mxu0 0.0
    %1142 = vmatprep.subr.mxu0 0.0
    %1143 = vmatpush1.msra.mxu0 0.0
    %1144 = vmatprep.subr.mxu0 0.0
    %1145 = vmatpush1.msra.mxu0 0.0
    %1146 = vmatprep.subr.mxu0 0.0
    %1147 = vmatpush1.msra.mxu0 0.0
    %1148 = vmatprep.subr.mxu0 0.0
    %1149 = vmatpush1.msra.mxu0 0.0
    %1150 = vmatprep.subr.mxu0 0.0
    %1151 = vmatpush1.msra.mxu0 0.0
    %1152 = vmatprep.subr.mxu0 0.0
    %1153 = vmatpush1.msra.mxu0 0.0
    %1154 = vmatprep.subr.mxu0 0.0
    %1155 = vmatpush1.msra.mxu0 0.0
    %1156 = vmatprep.subr.mxu0 0.0
    %1157 = vmatpush1.msra.mxu0 0.0
    %1158 = vmatprep.subr.mxu0 0.0
    %1159 = vmatpush1.msra.mxu0 0.0
    %1160 = vmatprep.subr.mxu0 0.0
    %1161 = vmatpush1.msra.mxu0 0.0
    %1162 = vmatprep.subr.mxu0 0.0
    %1163 = vmatpush1.msra.mxu0 0.0
    %1164 = vmatprep.mubr.f32.mxu0 0.0
    %1165 = vmatmul.mubr.f32.gmra.mrb[0].mxu0 %v1095
    %v1166 = vpop.f32.mrb[0].mxu0
    %v1167 = vadd.f32 %v1092, %v1166
    %v1168 = vpop.f32.mrb[0].mxu0
    %1169 = vmatprep.mubr.f32.mxu0 0.0
    %1170 = vmatmul.mubr.f32.gmra.mrb[0].mxu0 %v1098
    %v1171 = vpop.f32.mrb[0].mxu0
    %v1172 = vadd.f32 %v1092, %v1171
    %v1173 = vpop.f32.mrb[0].mxu0
    %1174 = vdwg.mxu0
    %v1175 = vmul.f32 %v1167, 0.5
    %v1176 = vmul.f32 %v1172, 0.5
    %v1177 = vmul.f32 %v1167, 0.70710677
    %v1178 = vmul.f32 %v1172, 0.70710677
    %v1179 = vand.u32 2147483647, %v1177
    %v1180 = vand.u32 2147483647, %v1178
    %v1181 = vmul.f32 %v1179, 0.3275911
    %v1182 = vmul.f32 %v1180, 0.3275911
    %v1183 = vadd.f32 %v1181, 1.0
    %v1184 = vadd.f32 %v1182, 1.0
    %v1185 = vrcp.pop %v1183
    %v1186 = vmul.f32 1.0, %v1185
    %v1187 = vrcp.pop %v1184
    %v1188 = vmul.f32 1.0, %v1187
    %v1189 = vmul.f32 %v1186, 1.0614054
    %v1190 = vmul.f32 %v1188, 1.0614054
    %v1191 = vadd.f32 %v1189, -1.4531521
    %v1192 = vadd.f32 %v1190, -1.4531521
    %v1193 = vmul.f32 %v1191, %v1186
    %v1194 = vmul.f32 %v1192, %v1188
    %v1195 = vadd.f32 %v1193, 1.4214138
    %v1196 = vadd.f32 %v1194, 1.4214138
    %v1197 = vmul.f32 %v1195, %v1186
    %v1198 = vmul.f32 %v1196, %v1188
    %v1199 = vadd.f32 %v1197, -0.28449672
    %v1200 = vadd.f32 %v1198, -0.28449672
    %v1201 = vmul.f32 %v1199, %v1186
    %v1202 = vmul.f32 %v1200, %v1188
    %v1203 = vadd.f32 %v1201, 0.2548296
    %v1204 = vadd.f32 %v1202, 0.2548296
    %v1205 = vmul.f32 %v1203, %v1186
    %v1206 = vmul.f32 %v1204, %v1188
    %v1207 = vsub.f32 0.0, %v1179
    %v1208 = vsub.f32 0.0, %v1180
    %v1209 = vmul.f32 %v1207, %v1179
    %v1210 = vmul.f32 %v1208, %v1180
    %v1211 = vmul.f32 %v1209, 1.442695
    %v1212 = vpow.pop %v1211
    %v1213 = vmul.f32 %v1210, 1.442695
    %v1214 = vpow.pop %v1213
    %v1215 = vmul.f32 %v1205, %v1212
    %v1216 = vmul.f32 %v1206, %v1214
    %v1217 = vsub.f32 1.0, %v1215
    %v1218 = vsub.f32 1.0, %v1216
    %vm1219 = vcmp.ge.f32.partialorder %v1177, 0.0
    %vm1220 = vcmp.ge.f32.partialorder %v1178, 0.0
    %v1221 = vsub.f32 0.0, %v1217
    %v1222 = vsub.f32 0.0, %v1218
    %v1223 = vsel %vm1219, %v1217, %v1221
    %v1224 = vsel %vm1220, %v1218, %v1222
    %v1225 = vadd.f32 %v1223, 1.0
    %v1226 = vadd.f32 %v1224, 1.0
    %v1227 = vmul.f32 %v1175, %v1225
    %v1228 = vmul.f32 %v1176, %v1226
    %v1229 = vld [vmem:[%s10] sm:$0xff]
    %v1230 = vld [vmem:[%s10 + $0x8] sm:$0xff]
    %v1231 = vld [vmem:[%s10 + $0x10] sm:$0xff]
    %v1232 = vld [vmem:[%s10 + $0x18] sm:$0xff]
    %v1233 = vld [vmem:[%s10 + $0x20] sm:$0xff]
    %v1234 = vld [vmem:[%s10 + $0x28] sm:$0xff]
    %v1235 = vld [vmem:[%s10 + $0x30] sm:$0xff]
    %v1236 = vld [vmem:[%s10 + $0x38] sm:$0xff]
    %v1237 = vld [vmem:[%s11] sm:$0x1]
    %v1239 = vlaneseq
    %v1240 = vshrl.u32 %v1239, 7
    %v1241 = vsub.s32 0, %v1240
    %v1242 = vrot.slane %v1237, %v1241
    %vm1244 = vcmask 523264
    %v1246 = vsel %vm1244, %v1227, 0
    %v1249 = vsel %vm1244, %v1228, 0
    %1251 = vmatprep.subr.mxu0 0.0
    %1252 = vmatpush1.msra.mxu0 %v1229
    %1253 = vmatprep.subr.mxu0 0.0
    %1254 = vmatpush1.msra.mxu0 %v1230
    %1255 = vmatprep.subr.mxu0 0.0
    %1256 = vmatpush1.msra.mxu0 %v1231
    %1257 = vmatprep.subr.mxu0 0.0
    %1258 = vmatpush1.msra.mxu0 %v1232
    %1259 = vmatprep.subr.mxu0 0.0
    %1260 = vmatpush1.msra.mxu0 %v1233
    %1261 = vmatprep.subr.mxu0 0.0
    %1262 = vmatpush1.msra.mxu0 %v1234
    %1263 = vmatprep.subr.mxu0 0.0
    %1264 = vmatpush1.msra.mxu0 %v1235
    %1265 = vmatprep.subr.mxu0 0.0
    %1266 = vmatpush1.msra.mxu0 %v1236
    %1267 = vmatprep.subr.mxu0 0.0
    %1268 = vmatpush1.msra.mxu0 0.0
    %1269 = vmatprep.subr.mxu0 0.0
    %1270 = vmatpush1.msra.mxu0 0.0
    %1271 = vmatprep.subr.mxu0 0.0
    %1272 = vmatpush1.msra.mxu0 0.0
    %1273 = vmatprep.subr.mxu0 0.0
    %1274 = vmatpush1.msra.mxu0 0.0
    %1275 = vmatprep.subr.mxu0 0.0
    %1276 = vmatpush1.msra.mxu0 0.0
    %1277 = vmatprep.subr.mxu0 0.0
    %1278 = vmatpush1.msra.mxu0 0.0
    %1279 = vmatprep.subr.mxu0 0.0
    %1280 = vmatpush1.msra.mxu0 0.0
    %1281 = vmatprep.subr.mxu0 0.0
    %1282 = vmatpush1.msra.mxu0 0.0
    %1283 = vmatprep.subr.mxu0 0.0
    %1284 = vmatpush1.msra.mxu0 0.0
    %1285 = vmatprep.subr.mxu0 0.0
    %1286 = vmatpush1.msra.mxu0 0.0
    %1287 = vmatprep.subr.mxu0 0.0
    %1288 = vmatpush1.msra.mxu0 0.0
    %1289 = vmatprep.subr.mxu0 0.0
    %1290 = vmatpush1.msra.mxu0 0.0
    %1291 = vmatprep.subr.mxu0 0.0
    %1292 = vmatpush1.msra.mxu0 0.0
    %1293 = vmatprep.subr.mxu0 0.0
    %1294 = vmatpush1.msra.mxu0 0.0
    %1295 = vmatprep.subr.mxu0 0.0
    %1296 = vmatpush1.msra.mxu0 0.0
    %1297 = vmatprep.subr.mxu0 0.0
    %1298 = vmatpush1.msra.mxu0 0.0
    %1299 = vmatprep.subr.mxu0 0.0
    %1300 = vmatpush1.msra.mxu0 0.0
    %1301 = vmatprep.subr.mxu0 0.0
    %1302 = vmatpush1.msra.mxu0 0.0
    %1303 = vmatprep.subr.mxu0 0.0
    %1304 = vmatpush1.msra.mxu0 0.0
    %1305 = vmatprep.subr.mxu0 0.0
    %1306 = vmatpush1.msra.mxu0 0.0
    %1307 = vmatprep.subr.mxu0 0.0
    %1308 = vmatpush1.msra.mxu0 0.0
    %1309 = vmatprep.subr.mxu0 0.0
    %1310 = vmatpush1.msra.mxu0 0.0
    %1311 = vmatprep.subr.mxu0 0.0
    %1312 = vmatpush1.msra.mxu0 0.0
    %1313 = vmatprep.subr.mxu0 0.0
    %1314 = vmatpush1.msra.mxu0 0.0
    %1315 = vmatprep.mubr.f32.mxu0 0.0
    %1316 = vmatmul.mubr.f32.gmra.mrb[0].mxu0 %v1246
    %v1317 = vpop.f32.mrb[0].mxu0
    %v1318 = vadd.f32 %v1242, %v1317
    %v1319 = vpop.f32.mrb[0].mxu0
    %1320 = vmatprep.mubr.f32.mxu0 0.0
    %1321 = vmatmul.mubr.f32.gmra.mrb[0].mxu0 %v1249
    %v1322 = vpop.f32.mrb[0].mxu0
    %v1323 = vadd.f32 %v1242, %v1322
    %v1324 = vpop.f32.mrb[0].mxu0
    %1325 = vdwg.mxu0
    %v1326 = vadd.f32 %v1318, %v1081
    %v1327 = vadd.f32 %v1323, %v1082
    %v1328 = vld [vmem:[%s12] sm:$0x1]
    %v1329 = vld [vmem:[%s13] sm:$0x1]
    %v1330 = vsel %vm63, %v1326, 0.0
    %1331 = vadd.xlane.f32.xlu0 %v1330
    %v1332 = vpop.xlane.xlu0 %1331
    %v1333 = vsel %vm63, %v1327, 0.0
    %1334 = vadd.xlane.f32.xlu0 %v1333
    %v1335 = vpop.xlane.xlu0 %1334
    %v1336 = vmul.f32 %v1332, %v1046
    %v1337 = vmul.f32 %v1335, %v1046
    %v1338 = vsub.f32 %v1326, %v1336
    %v1339 = vsub.f32 %v1327, %v1337
    %v1340 = vmul.f32 %v1338, %v1338
    %v1341 = vmul.f32 %v1339, %v1339
    %v1342 = vsel %vm63, %v1340, 0.0
    %1343 = vadd.xlane.f32.xlu0 %v1342
    %v1344 = vpop.xlane.xlu0 %1343
    %v1345 = vsel %vm63, %v1341, 0.0
    %1346 = vadd.xlane.f32.xlu0 %v1345
    %v1347 = vpop.xlane.xlu0 %1346
    %v1348 = vmul.f32 %v1344, %v1046
    %v1349 = vmul.f32 %v1347, %v1046
    %v1350 = vadd.f32 %v1348, 1e-12
    %v1351 = vadd.f32 %v1349, 1e-12
    %v1352 = vrsqrt.pop %v1350
    %v1353 = vrsqrt.pop %v1351
    %v1354 = vmul.f32 %v1338, %v1352
    %v1355 = vmul.f32 %v1339, %v1353
    %v1357 = vlaneseq
    %v1358 = vshrl.u32 %v1357, 7
    %v1359 = vsub.s32 0, %v1358
    %v1360 = vrot.slane %v1328, %v1359
    %v1362 = vmul.f32 %v1354, %v1360
    %v1363 = vmul.f32 %v1355, %v1360
    %v1365 = vlaneseq
    %v1366 = vshrl.u32 %v1365, 7
    %v1367 = vsub.s32 0, %v1366
    %v1368 = vrot.slane %v1329, %v1367
    %v1370 = vadd.f32 %v1362, %v1368
    %v1371 = vadd.f32 %v1363, %v1368
    %1372 = vst.msk [vmem:[#allocation2] sm:$0xff] %vm63, %v1370
    %1373 = vst.msk [vmem:[#allocation2 + $0x8] sm:$0xff] %vm63, %v1371
    // Predicated region
    $region58: #{bert_skip_encoder.1} parent=1 // pred_check
      _
    $region59: #{bert_skip_encoder.1} parent=1 // pred_check_branch
      %1375 = sbr.rel (0) target = $region61
    $region60: #{bert_skip_encoder.1} parent=1 // pred_region
      %s1377 = ssub.s32 256, 256
      %1378 = vsyncadd [#allocation3], %s1377
      %s1379 = sshll.u32 [#allocation2], 4
      %s1380 = int_to_ptr.vmem [resolvable:$true] %s1379
      %1385 = dma.vmem_to_hbm [thread:$0]  %s1380, 256, %s14, [#allocation3], 128, 128, 8
    $region61: #{bert_skip_encoder.1} parent=1 // pred_fallthru
      _
    // Predicated region
    $region62: #{bert_skip_encoder.1} parent=1 // pred_check
      _
    $region63: #{bert_skip_encoder.1} parent=1 // pred_check_branch
      %1387 = sbr.rel (0) target = $region65
    $region64: #{bert_skip_encoder.1} parent=1 // pred_region
      %1388 = dma.done [#allocation3], 256
    $region65: #{bert_skip_encoder.1} parent=1 // pred_fallthru
      _
    %1389 = vsyncpa [#allocation3], 1

</llo_original>
